<compile_context>
chip_gen: v7x
topology: tpu7x:2x2x1
jax: 0.10.0
libtpu: 0.0.40
codegen_flags: <defaults>
</compile_context>

<pallas_src>
import math
from functools import partial

import jax
import jax.numpy as jnp
from jax.experimental import pallas as pl
from jax.experimental.pallas import tpu as pltpu

SCALE = math.sqrt(0.5)                      # torch.sqrt(FloatTensor([0.5]))


def _default_vmem_limit():
    """Per-generation VMEM limit: ~3/4 of physical (96 MiB v5e/v6e, 48 MiB v7x)."""
    try:
        info = pltpu.get_tpu_info()
        cap = int(getattr(info, "vmem_capacity_bytes", 0) or 0)
        if cap > 0:
            return max(32 * 1024 * 1024, (cap * 3) // 4)
    except Exception:
        pass
    return 48 * 1024 * 1024


VMEM_LIMIT_BYTES = _default_vmem_limit()


# ----------------------------------------------------------------------------
# Tiling helpers
# ----------------------------------------------------------------------------
def _pick_row_tile(n, vmem_limit):
    """Row tile for the [N, C] embed/linear kernel (multiple of 8 or == N)."""
    target = 1024 if vmem_limit >= 80 * 1024 * 1024 else 512
    return n if n <= target else target      # ragged tail is masked by Pallas


def _pick_seq_tile(s, target=256):
    """In-kernel sequence chunk for the conv accumulator (divisor of S)."""
    if s <= target:
        return s
    for t in range(target, 0, -1):
        if s % t == 0:
            return t
    return s


# ----------------------------------------------------------------------------
# Kernel 1: embedding lookup (in-kernel bf16 one-hot) + emb2hid linear.
#   ids:[TILE_N,1] i32   emb_tbl:[V,E] bf16   w:[E,H] bf16   b:[1,H] f32
#   outputs: embedded [TILE_N,E] f32, conv_input [TILE_N,H] f32
# ----------------------------------------------------------------------------
def _embed_proj_kernel(ids_ref, emb_tbl_ref, w_ref, b_ref, embedded_ref, convin_ref):
    tn = ids_ref.shape[0]
    v = emb_tbl_ref.shape[0]
    ids = ids_ref[...]                                           # [tn, 1] int32
    iota = jax.lax.broadcasted_iota(jnp.int32, (tn, v), 1)       # [tn, V]
    onehot = (iota == ids).astype(emb_tbl_ref.dtype)             # exact 0/1 in bf16
    emb = jnp.dot(onehot, emb_tbl_ref[...],
                  preferred_element_type=jnp.float32)            # [tn, E] f32
    embedded_ref[...] = emb
    convin_ref[...] = (
        jnp.dot(emb.astype(w_ref.dtype), w_ref[...],
                preferred_element_type=jnp.float32)
        + b_ref[...])


# ----------------------------------------------------------------------------
# Kernel 2: fused conv/GLU/residual stack + hid2emb + final combine.
# grid = (B, n_layers).  Activation lives in a bf16 ping-pong padded scratch:
#   xpad:[2, S + 2*halo, H] bf16   (halo = pad rounded up to a sublane multiple)
# Layer l reads slot (l % 2) and writes slot (1 - l % 2); the last layer instead
# emits combined [S, E] directly to the output block.
# ----------------------------------------------------------------------------
def _conv_stack_fused_kernel(x_ref, emb_ref, w_ref, b_ref, wh_ref, bh_ref,
                             out_ref, xpad_ref,
                             *, k, n_layers, seq_len, hid, tile_s, halo):
    pad = (k - 1) // 2
    layer = pl.program_id(1)
    cur = layer % 2                   # slot holding this layer's input
    nxt = 1 - cur                     # slot receiving this layer's output

    # Layer 0: zero the (sublane-aligned) halo bands of both slots — they are
    # never overwritten afterwards — and stage the emb2hid projection into slot 0.
    @pl.when(layer == 0)
    def _():
        if halo > 0:
            z = jnp.zeros((halo, hid), xpad_ref.dtype)
            for s in range(2):
                xpad_ref[s, pl.ds(0, halo), :] = z
                xpad_ref[s, pl.ds(halo + seq_len, halo), :] = z
        xpad_ref[0, pl.ds(halo, seq_len), :] = x_ref[...].astype(xpad_ref.dtype)

    x_cur = xpad_ref.at[cur]          # [S + 2*halo, H] bf16 view (this layer input)
    x_nxt = xpad_ref.at[nxt]

    bias = b_ref[...]                 # [1, 2H] f32
    base = halo - pad

    # Static chunk loop over the sequence (few chunks at these shapes).
    # TODO(synk): switch to lax.fori_loop(unroll=True) when S/tile_s grows large.
    for off in range(0, seq_len, tile_s):
        ts = min(tile_s, seq_len - off)
        # k conv taps: bf16 operands, f32 MXU accumulation.
        acc = jnp.dot(x_cur[pl.ds(base + off, ts), :], w_ref[0],
                      preferred_element_type=jnp.float32)
        for t in range(1, k):
            acc = acc + jnp.dot(x_cur[pl.ds(base + off + t, ts), :], w_ref[t],
                                preferred_element_type=jnp.float32)
        acc = acc + bias                                         # [ts, 2H] f32
        glu = acc[:, :hid] * jax.nn.sigmoid(acc[:, hid:])        # F.glu (channels)
        residual = x_cur[pl.ds(halo + off, ts), :].astype(jnp.float32)
        y = (glu + residual) * SCALE                             # layer output, f32

        # Not the last layer: write directly into the next layer's padded slot.
        @pl.when(layer < n_layers - 1)
        def _():
            x_nxt[pl.ds(halo + off, ts), :] = y.astype(xpad_ref.dtype)

        # Last layer: fuse hid2emb + final residual combine, emit [ts, E].
        @pl.when(layer == n_layers - 1)
        def _():
            conved = (jnp.dot(y.astype(wh_ref.dtype), wh_ref[...],
                              preferred_element_type=jnp.float32)
                      + bh_ref[...])
            out_ref[pl.ds(off, ts), :] = (conved + emb_ref[pl.ds(off, ts), :]) * SCALE


# ----------------------------------------------------------------------------
# Parameter init (deterministic synthetic — shapes follow nn.Module.__init__)
# ----------------------------------------------------------------------------
def init_params(key, input_dim, emb_dim, hid_dim, n_layers, kernel_size):
    ks = jax.random.split(key, 5 + 2 * n_layers)
    p = {}
    p["emb_table"] = jax.random.normal(ks[0], (input_dim, emb_dim), jnp.float32) * 0.1
    # nn.Linear stores W as [out, in]; keep W^T so kernels do x @ W directly.
    p["w_e2h"] = jax.random.normal(ks[1], (emb_dim, hid_dim), jnp.float32) / math.sqrt(emb_dim)
    p["b_e2h"] = jax.random.normal(ks[2], (1, hid_dim), jnp.float32) * 0.01
    p["w_h2e"] = jax.random.normal(ks[3], (hid_dim, emb_dim), jnp.float32) / math.sqrt(hid_dim)
    p["b_h2e"] = jax.random.normal(ks[4], (1, emb_dim), jnp.float32) * 0.01
    conv_ws, conv_bs = [], []
    for i in range(n_layers):
        # PyTorch Conv1d weight: [2H, H, k] -> repack as [k, H, 2H] taps.
        w = jax.random.normal(ks[5 + 2 * i], (2 * hid_dim, hid_dim, kernel_size),
                              jnp.float32) / math.sqrt(hid_dim * kernel_size)
        conv_ws.append(jnp.transpose(w, (2, 1, 0)))
        conv_bs.append(jax.random.normal(ks[6 + 2 * i], (1, 2 * hid_dim),
                                         jnp.float32) * 0.01)
    p["conv_w"] = jnp.stack(conv_ws)     # [L, k, H, 2H]
    p["conv_b"] = jnp.stack(conv_bs)     # [L, 1, 2H]
    return p


# ----------------------------------------------------------------------------
# Forward
# ----------------------------------------------------------------------------
def encoder_forward(params, src, *, kernel_size, n_layers):
    B, S = src.shape
    V, E = params["emb_table"].shape
    H = params["w_e2h"].shape[1]
    N = B * S
    pad = (kernel_size - 1) // 2
    halo = ((pad + 7) // 8) * 8 if pad > 0 else 0   # sublane-aligned zero halo

    ids = src.reshape(N, 1).astype(jnp.int32)

    # bf16 matmul operands (accumulation stays f32 inside the kernels).
    emb_tbl_bf = params["emb_table"].astype(jnp.bfloat16)
    w_e2h_bf = params["w_e2h"].astype(jnp.bfloat16)
    w_h2e_bf = params["w_h2e"].astype(jnp.bfloat16)
    conv_w_bf = params["conv_w"].astype(jnp.bfloat16)

    tile_n = _pick_row_tile(N, VMEM_LIMIT_BYTES)
    tile_s = _pick_seq_tile(S)
    n_row_tiles = pl.cdiv(N, tile_n)

    # --- kernel 1: embedding + emb2hid (row-tiled, weights resident) -----------
    embedded_flat, convin_flat = pl.pallas_call(
        _embed_proj_kernel,
        grid=(n_row_tiles,),
        out_shape=(jax.ShapeDtypeStruct((N, E), jnp.float32),
                   jax.ShapeDtypeStruct((N, H), jnp.float32)),
        in_specs=[
            pl.BlockSpec((tile_n, 1), lambda i: (i, 0)),
            pl.BlockSpec((V, E), lambda i: (0, 0)),
            pl.BlockSpec((E, H), lambda i: (0, 0)),
            pl.BlockSpec((1, H), lambda i: (0, 0)),
        ],
        out_specs=(pl.BlockSpec((tile_n, E), lambda i: (i, 0)),
                   pl.BlockSpec((tile_n, H), lambda i: (i, 0))),
        compiler_params=pltpu.CompilerParams(
            dimension_semantics=("parallel",),
            vmem_limit_bytes=VMEM_LIMIT_BYTES),
        cost_estimate=pl.CostEstimate(
            flops=2 * N * V * E + 2 * N * E * H,
            transcendentals=0,
            bytes_accessed=4 * N + 2 * V * E + 2 * E * H + 4 * H + 4 * N * (E + H)),
    )(ids, emb_tbl_bf, w_e2h_bf, params["b_e2h"])

    conv_input = convin_flat.reshape(B, S, H)       # [B, S, H] channel-last
    embedded = embedded_flat.reshape(B, S, E)       # [B, S, E]

    # --- kernel 2: fused conv stack + hid2emb + final combine -------------------
    # Activation stays in the bf16 ping-pong scratch across the 'arbitrary' layer
    # axis; conv weights/biases stream per layer; hid2emb weights stay resident.
    # TODO(synk): on v7x with B == 1 one TensorCore idles — sequence-split with a
    # recomputed halo would be needed for a second parallel axis.
    combined = pl.pallas_call(
        partial(_conv_stack_fused_kernel,
                k=kernel_size, n_layers=n_layers, seq_len=S, hid=H,
                tile_s=tile_s, halo=halo),
        grid=(B, n_layers),
        out_shape=jax.ShapeDtypeStruct((B, S, E), jnp.float32),
        in_specs=[
            pl.BlockSpec((None, S, H), lambda b, l: (b, 0, 0)),
            pl.BlockSpec((None, S, E), lambda b, l: (b, 0, 0)),
            pl.BlockSpec((None, kernel_size, H, 2 * H), lambda b, l: (l, 0, 0, 0)),
            pl.BlockSpec((None, 1, 2 * H), lambda b, l: (l, 0, 0)),
            pl.BlockSpec((H, E), lambda b, l: (0, 0)),
            pl.BlockSpec((1, E), lambda b, l: (0, 0)),
        ],
        out_specs=pl.BlockSpec((None, S, E), lambda b, l: (b, 0, 0)),
        scratch_shapes=[pltpu.VMEM((2, S + 2 * halo, H), jnp.bfloat16)],
        compiler_params=pltpu.CompilerParams(
            dimension_semantics=("parallel", "arbitrary"),
            vmem_limit_bytes=VMEM_LIMIT_BYTES),
        cost_estimate=pl.CostEstimate(
            flops=2 * B * n_layers * S * kernel_size * H * 2 * H
                  + 2 * B * S * H * E
                  + 6 * B * n_layers * S * H,
            transcendentals=B * n_layers * S * H,
            bytes_accessed=4 * B * S * (H + 2 * E)
                           + n_layers * (4 * kernel_size * H * H + 8 * H)
                           + 2 * H * E + 4 * E),
    )(conv_input, embedded, conv_w_bf, params["conv_b"], w_h2e_bf, params["b_h2e"])

    # The PyTorch module (as specified) returns (combined, combined).
    return combined, combined


# ----------------------------------------------------------------------------
# Pure-JAX (f32) reference of the PyTorch forward, for validation.
# ----------------------------------------------------------------------------
def encoder_reference(params, src, *, kernel_size, n_layers):
    pad = (kernel_size - 1) // 2
    emb = params["emb_table"][src]                               # [B, S, E]
    x = emb @ params["w_e2h"] + params["b_e2h"]                  # [B, S, H]
    H = x.shape[-1]
    for i in range(n_layers):
        xp = jnp.pad(x, ((0, 0), (pad, pad), (0, 0)))
        w = params["conv_w"][i]                                  # [k, H, 2H]
        acc = sum(jnp.einsum("bsh,ho->bso", xp[:, t:t + x.shape[1]], w[t])
                  for t in range(kernel_size))
        acc = acc + params["conv_b"][i]                          # [1, 2H]
        a, g = acc[..., :H], acc[..., H:]
        x = (a * jax.nn.sigmoid(g) + x) * SCALE
    conved = x @ params["w_h2e"] + params["b_h2e"]
    return (conved + emb) * SCALE


if __name__ == "__main__":
    # Small demo shapes; channel dims are multiples of 128 for lane-dense layout.
    input_dim, emb_dim, hid_dim = 64, 128, 128
    n_layers, kernel_size = 3, 3
    B, S = 2, 16

    key = jax.random.PRNGKey(0)
    k_param, k_src = jax.random.split(key)
    params = init_params(k_param, input_dim, emb_dim, hid_dim, n_layers, kernel_size)
    src = jax.random.randint(k_src, (B, S), 0, input_dim, dtype=jnp.int32)

    fwd = jax.jit(partial(encoder_forward, kernel_size=kernel_size, n_layers=n_layers))
    combined, combined2 = fwd(params, src)
    jax.block_until_ready(combined)

    assert combined.shape == (B, S, emb_dim)
    assert combined.dtype == jnp.float32
    assert jnp.array_equal(combined, combined2)

    # Tolerances account for bf16 matmul operands / bf16 residual scratch
    # (f32 accumulation everywhere).
    ref = encoder_reference(params, src, kernel_size=kernel_size, n_layers=n_layers)
    assert jnp.allclose(combined, ref, rtol=2e-2, atol=2e-2), (
        float(jnp.max(jnp.abs(combined - ref))))

    print("KERNEL_OK")
</pallas_src>

<mosaic_0001>
module attributes {stable_mosaic.version = 11 : i64} {
  func.func @_embed_proj_kernel(%arg0: i32, %arg1: memref<32x1xi32, #tpu.memory_space<vmem>>, %arg2: memref<64x128xbf16, #tpu.memory_space<vmem>>, %arg3: memref<128x128xbf16, #tpu.memory_space<vmem>>, %arg4: memref<1x128xf32, #tpu.memory_space<vmem>>, %arg5: memref<32x128xf32, #tpu.memory_space<vmem>>, %arg6: memref<32x128xf32, #tpu.memory_space<vmem>>) attributes {dimension_semantics = [#tpu.dimension_semantics<parallel>], iteration_bounds = array<i64: 1>, scalar_prefetch = 0 : i64, scratch_operands = 0 : i64, tpu.core_type = #tpu.core_type<tc>, window_params = [{transform_indices = @transform_0, window_bounds = array<i64: 32, 1>}, {pipeline_mode = #tpu.pipeline_mode<synchronous>, transform_indices = @transform_1, window_bounds = array<i64: 64, 128>}, {pipeline_mode = #tpu.pipeline_mode<synchronous>, transform_indices = @transform_2, window_bounds = array<i64: 128, 128>}, {pipeline_mode = #tpu.pipeline_mode<synchronous>, transform_indices = @transform_3, window_bounds = array<i64: 1, 128>}, {transform_indices = @transform_4, window_bounds = array<i64: 32, 128>}, {transform_indices = @transform_5, window_bounds = array<i64: 32, 128>}]} {
    %c0 = arith.constant 0 : index
    %c0_0 = arith.constant 0 : index
    %0 = vector.load %arg1[%c0, %c0_0] : memref<32x1xi32, #tpu.memory_space<vmem>>, vector<32x1xi32>
    %1 = tpu.iota {dimensions = array<i32: 1>} : vector<32x64xi32>
    %2 = vector.broadcast %0 : vector<32x1xi32> to vector<32x64xi32>
    %3 = arith.cmpi eq, %1, %2 : vector<32x64xi32>
    %4 = arith.extui %3 : vector<32x64xi1> to vector<32x64xi32>
    %5 = arith.sitofp %4 : vector<32x64xi32> to vector<32x64xf32>
    %6 = arith.truncf %5 : vector<32x64xf32> to vector<32x64xbf16>
    %c0_1 = arith.constant 0 : index
    %c0_2 = arith.constant 0 : index
    %7 = vector.load %arg2[%c0_1, %c0_2] : memref<64x128xbf16, #tpu.memory_space<vmem>>, vector<64x128xbf16>
    %cst = arith.constant dense<0.000000e+00> : vector<32x128xf32>
    %8 = tpu.matmul %6, %7, %cst {dimension_numbers = #tpu.dot_dimension_numbers<[1], [0], [0], [1], [0, 0, 1, 1], [], []>} : vector<32x64xbf16>, vector<64x128xbf16>, vector<32x128xf32> -> vector<32x128xf32>
    %c0_3 = arith.constant 0 : index
    %c0_4 = arith.constant 0 : index
    %9 = vector.load %arg5[%c0_3, %c0_4] : memref<32x128xf32, #tpu.memory_space<vmem>>, vector<32x128xf32>
    tpu.vector_store %arg5[%c0_3, %c0_4], %8 {strides = array<i32>} : memref<32x128xf32, #tpu.memory_space<vmem>>, vector<32x128xf32>,
    %10 = arith.truncf %8 : vector<32x128xf32> to vector<32x128xbf16>
    %c0_5 = arith.constant 0 : index
    %c0_6 = arith.constant 0 : index
    %11 = vector.load %arg3[%c0_5, %c0_6] : memref<128x128xbf16, #tpu.memory_space<vmem>>, vector<128x128xbf16>
    %cst_7 = arith.constant dense<0.000000e+00> : vector<32x128xf32>
    %12 = tpu.matmul %10, %11, %cst_7 {dimension_numbers = #tpu.dot_dimension_numbers<[1], [0], [0], [1], [0, 0, 1, 1], [], []>} : vector<32x128xbf16>, vector<128x128xbf16>, vector<32x128xf32> -> vector<32x128xf32>
    %c0_8 = arith.constant 0 : index
    %c0_9 = arith.constant 0 : index
    %13 = vector.load %arg4[%c0_8, %c0_9] : memref<1x128xf32, #tpu.memory_space<vmem>>, vector<1x128xf32>
    %14 = vector.broadcast %13 : vector<1x128xf32> to vector<32x128xf32>
    %15 = arith.addf %12, %14 : vector<32x128xf32>
    %c0_10 = arith.constant 0 : index
    %c0_11 = arith.constant 0 : index
    %16 = vector.load %arg6[%c0_10, %c0_11] : memref<32x128xf32, #tpu.memory_space<vmem>>, vector<32x128xf32>
    tpu.vector_store %arg6[%c0_10, %c0_11], %15 {strides = array<i32>} : memref<32x128xf32, #tpu.memory_space<vmem>>, vector<32x128xf32>,
    return
  }
  func.func @transform_0(%arg0: i32) -> (i32, i32) {
    %c0_i32 = arith.constant 0 : i32
    %c0_i32_0 = arith.constant 0 : i32
    return %arg0, %c0_i32 : i32, i32
  }
  func.func @transform_1(%arg0: i32) -> (i32, i32) {
    %c0_i32 = arith.constant 0 : i32
    %c0_i32_0 = arith.constant 0 : i32
    %c0_i32_1 = arith.constant 0 : i32
    return %c0_i32, %c0_i32_0 : i32, i32
  }
  func.func @transform_2(%arg0: i32) -> (i32, i32) {
    %c0_i32 = arith.constant 0 : i32
    %c0_i32_0 = arith.constant 0 : i32
    %c0_i32_1 = arith.constant 0 : i32
    return %c0_i32, %c0_i32_0 : i32, i32
  }
  func.func @transform_3(%arg0: i32) -> (i32, i32) {
    %c0_i32 = arith.constant 0 : i32
    %c0_i32_0 = arith.constant 0 : i32
    %c0_i32_1 = arith.constant 0 : i32
    return %c0_i32, %c0_i32_0 : i32, i32
  }
  func.func @transform_4(%arg0: i32) -> (i32, i32) {
    %c0_i32 = arith.constant 0 : i32
    %c0_i32_0 = arith.constant 0 : i32
    return %arg0, %c0_i32 : i32, i32
  }
  func.func @transform_5(%arg0: i32) -> (i32, i32) {
    %c0_i32 = arith.constant 0 : i32
    %c0_i32_0 = arith.constant 0 : i32
    return %arg0, %c0_i32 : i32, i32
  }
}

module attributes {stable_mosaic.version = 11 : i64} {
  func.func @_conv_stack_fused_kernel(%arg0: i32, %arg1: i32, %arg2: memref<1x16x128xf32, #tpu.memory_space<vmem>>, %arg3: memref<1x16x128xf32, #tpu.memory_space<vmem>>, %arg4: memref<1x3x128x256xbf16, #tpu.memory_space<vmem>>, %arg5: memref<1x1x256xf32, #tpu.memory_space<vmem>>, %arg6: memref<128x128xbf16, #tpu.memory_space<vmem>>, %arg7: memref<1x128xf32, #tpu.memory_space<vmem>>, %arg8: memref<1x16x128xf32, #tpu.memory_space<vmem>>, %arg9: memref<2x32x128xbf16, #tpu.memory_space<vmem>>) attributes {dimension_semantics = [#tpu.dimension_semantics<parallel>, #tpu.dimension_semantics<arbitrary>], iteration_bounds = array<i64: 2, 3>, scalar_prefetch = 0 : i64, scratch_operands = 1 : i64, tpu.core_type = #tpu.core_type<tc>, window_params = [{transform_indices = @transform_0, window_bounds = array<i64: 1, 16, 128>}, {transform_indices = @transform_1, window_bounds = array<i64: 1, 16, 128>}, {transform_indices = @transform_2, window_bounds = array<i64: 1, 3, 128, 256>}, {transform_indices = @transform_3, window_bounds = array<i64: 1, 1, 256>}, {pipeline_mode = #tpu.pipeline_mode<synchronous>, transform_indices = @transform_4, window_bounds = array<i64: 128, 128>}, {pipeline_mode = #tpu.pipeline_mode<synchronous>, transform_indices = @transform_5, window_bounds = array<i64: 1, 128>}, {transform_indices = @transform_6, window_bounds = array<i64: 1, 16, 128>}]} {
    %c2_i32 = arith.constant 2 : i32
    %c0_i32 = arith.constant 0 : i32
    %0 = arith.cmpi eq, %c2_i32, %c0_i32 : i32
    %c1_i32 = arith.constant 1 : i32
    %1 = arith.select %0, %c1_i32, %c2_i32 : i32
    %2 = arith.remsi %arg1, %1 : i32
    %c0_i32_0 = arith.constant 0 : i32
    %3 = arith.cmpi ne, %2, %c0_i32_0 : i32
    %c0_i32_1 = arith.constant 0 : i32
    %4 = arith.cmpi slt, %2, %c0_i32_1 : i32
    %c0_i32_2 = arith.constant 0 : i32
    %5 = arith.cmpi slt, %1, %c0_i32_2 : i32
    %6 = arith.xori %4, %5 : i1
    %7 = arith.andi %6, %3 : i1
    %8 = arith.addi %2, %1 : i32
    %9 = arith.select %7, %8, %2 : i32
    %c1_i32_3 = arith.constant 1 : i32
    %10 = arith.subi %c1_i32_3, %9 : i32
    %c0_i32_4 = arith.constant 0 : i32
    %11 = arith.cmpi eq, %arg1, %c0_i32_4 : i32
    %12 = arith.extui %11 : i1 to i32
    %c0_i32_5 = arith.constant 0 : i32
    %13 = arith.cmpi ne, %12, %c0_i32_5 : i32
    scf.if %13 {
      %cst_39 = arith.constant 0.000000e+00 : bf16
      %59 = vector.broadcast %cst_39 : bf16 to vector<8x128xbf16>
      %c0_40 = arith.constant 0 : index
      %c0_41 = arith.constant 0 : index
      %c0_42 = arith.constant 0 : index
      %60 = vector.load %arg9[%c0_40, %c0_41, %c0_42] : memref<2x32x128xbf16, #tpu.memory_space<vmem>>, vector<1x8x128xbf16>
      %61 = vector.shape_cast %60 : vector<1x8x128xbf16> to vector<8x128xbf16>
      %62 = vector.shape_cast %59 : vector<8x128xbf16> to vector<1x8x128xbf16>
      tpu.vector_store %arg9[%c0_40, %c0_41, %c0_42], %62 {strides = array<i32>} : memref<2x32x128xbf16, #tpu.memory_space<vmem>>, vector<1x8x128xbf16>,
      %c0_43 = arith.constant 0 : index
      %c24 = arith.constant 24 : index
      %c0_44 = arith.constant 0 : index
      %63 = vector.load %arg9[%c0_43, %c24, %c0_44] : memref<2x32x128xbf16, #tpu.memory_space<vmem>>, vector<1x8x128xbf16>
      %64 = vector.shape_cast %63 : vector<1x8x128xbf16> to vector<8x128xbf16>
      %65 = vector.shape_cast %59 : vector<8x128xbf16> to vector<1x8x128xbf16>
      tpu.vector_store %arg9[%c0_43, %c24, %c0_44], %65 {strides = array<i32>} : memref<2x32x128xbf16, #tpu.memory_space<vmem>>, vector<1x8x128xbf16>,
      %c1_45 = arith.constant 1 : index
      %c0_46 = arith.constant 0 : index
      %c0_47 = arith.constant 0 : index
      %66 = vector.load %arg9[%c1_45, %c0_46, %c0_47] : memref<2x32x128xbf16, #tpu.memory_space<vmem>>, vector<1x8x128xbf16>
      %67 = vector.shape_cast %66 : vector<1x8x128xbf16> to vector<8x128xbf16>
      %68 = vector.shape_cast %59 : vector<8x128xbf16> to vector<1x8x128xbf16>
      tpu.vector_store %arg9[%c1_45, %c0_46, %c0_47], %68 {strides = array<i32>} : memref<2x32x128xbf16, #tpu.memory_space<vmem>>, vector<1x8x128xbf16>,
      %c1_48 = arith.constant 1 : index
      %c24_49 = arith.constant 24 : index
      %c0_50 = arith.constant 0 : index
      %69 = vector.load %arg9[%c1_48, %c24_49, %c0_50] : memref<2x32x128xbf16, #tpu.memory_space<vmem>>, vector<1x8x128xbf16>
      %70 = vector.shape_cast %69 : vector<1x8x128xbf16> to vector<8x128xbf16>
      %71 = vector.shape_cast %59 : vector<8x128xbf16> to vector<1x8x128xbf16>
      tpu.vector_store %arg9[%c1_48, %c24_49, %c0_50], %71 {strides = array<i32>} : memref<2x32x128xbf16, #tpu.memory_space<vmem>>, vector<1x8x128xbf16>,
      %c0_51 = arith.constant 0 : index
      %c0_52 = arith.constant 0 : index
      %c0_53 = arith.constant 0 : index
      %72 = vector.load %arg2[%c0_51, %c0_52, %c0_53] : memref<1x16x128xf32, #tpu.memory_space<vmem>>, vector<1x16x128xf32>
      %73 = vector.shape_cast %72 : vector<1x16x128xf32> to vector<16x128xf32>
      %74 = arith.truncf %73 : vector<16x128xf32> to vector<16x128xbf16>
      %c0_54 = arith.constant 0 : index
      %c8_55 = arith.constant 8 : index
      %c0_56 = arith.constant 0 : index
      %75 = vector.load %arg9[%c0_54, %c8_55, %c0_56] : memref<2x32x128xbf16, #tpu.memory_space<vmem>>, vector<1x16x128xbf16>
      %76 = vector.shape_cast %75 : vector<1x16x128xbf16> to vector<16x128xbf16>
      %77 = vector.shape_cast %74 : vector<16x128xbf16> to vector<1x16x128xbf16>
      tpu.vector_store %arg9[%c0_54, %c8_55, %c0_56], %77 {strides = array<i32>} : memref<2x32x128xbf16, #tpu.memory_space<vmem>>, vector<1x16x128xbf16>,
    } else {
    }
    %c0 = arith.constant 0 : index
    %c0_6 = arith.constant 0 : index
    %c0_7 = arith.constant 0 : index
    %14 = vector.load %arg5[%c0, %c0_6, %c0_7] : memref<1x1x256xf32, #tpu.memory_space<vmem>>, vector<1x1x256xf32>
    %15 = vector.shape_cast %14 : vector<1x1x256xf32> to vector<1x256xf32>
    %c0_i32_8 = arith.constant 0 : i32
    %c0_i32_9 = arith.constant 0 : i32
    %16 = tpu.memref_slice %arg9[%9, %c0_i32_8, %c0_i32_9] : memref<2x32x128xbf16, #tpu.memory_space<vmem>> -> memref<1x32x128xbf16, #tpu.memory_space<vmem>>
    %17 = tpu.memref_squeeze %16 : memref<1x32x128xbf16, #tpu.memory_space<vmem>> -> memref<32x128xbf16, #tpu.memory_space<vmem>>
    %c7 = arith.constant 7 : index
    %c0_10 = arith.constant 0 : index
    %18 = vector.load %17[%c7, %c0_10] : memref<32x128xbf16, #tpu.memory_space<vmem>>, vector<16x128xbf16>
    %c0_11 = arith.constant 0 : index
    %c0_12 = arith.constant 0 : index
    %c0_13 = arith.constant 0 : index
    %c0_14 = arith.constant 0 : index
    %19 = vector.load %arg4[%c0_11, %c0_12, %c0_13, %c0_14] : memref<1x3x128x256xbf16, #tpu.memory_space<vmem>>, vector<1x1x128x256xbf16>
    %20 = vector.shape_cast %19 : vector<1x1x128x256xbf16> to vector<128x256xbf16>
    %cst = arith.constant dense<0.000000e+00> : vector<16x256xf32>
    %21 = tpu.matmul %18, %20, %cst {dimension_numbers = #tpu.dot_dimension_numbers<[1], [0], [0], [1], [0, 0, 1, 1], [], []>} : vector<16x128xbf16>, vector<128x256xbf16>, vector<16x256xf32> -> vector<16x256xf32>
    %c0_i32_15 = arith.constant 0 : i32
    %c0_i32_16 = arith.constant 0 : i32
    %22 = tpu.memref_slice %arg9[%9, %c0_i32_15, %c0_i32_16] : memref<2x32x128xbf16, #tpu.memory_space<vmem>> -> memref<1x32x128xbf16, #tpu.memory_space<vmem>>
    %23 = tpu.memref_squeeze %22 : memref<1x32x128xbf16, #tpu.memory_space<vmem>> -> memref<32x128xbf16, #tpu.memory_space<vmem>>
    %c8 = arith.constant 8 : index
    %c0_17 = arith.constant 0 : index
    %24 = vector.load %23[%c8, %c0_17] : memref<32x128xbf16, #tpu.memory_space<vmem>>, vector<16x128xbf16>
    %c0_18 = arith.constant 0 : index
    %c1 = arith.constant 1 : index
    %c0_19 = arith.constant 0 : index
    %c0_20 = arith.constant 0 : index
    %25 = vector.load %arg4[%c0_18, %c1, %c0_19, %c0_20] : memref<1x3x128x256xbf16, #tpu.memory_space<vmem>>, vector<1x1x128x256xbf16>
    %26 = vector.shape_cast %25 : vector<1x1x128x256xbf16> to vector<128x256xbf16>
    %cst_21 = arith.constant dense<0.000000e+00> : vector<16x256xf32>
    %27 = tpu.matmul %24, %26, %cst_21 {dimension_numbers = #tpu.dot_dimension_numbers<[1], [0], [0], [1], [0, 0, 1, 1], [], []>} : vector<16x128xbf16>, vector<128x256xbf16>, vector<16x256xf32> -> vector<16x256xf32>
    %28 = arith.addf %21, %27 : vector<16x256xf32>
    %c0_i32_22 = arith.constant 0 : i32
    %c0_i32_23 = arith.constant 0 : i32
    %29 = tpu.memref_slice %arg9[%9, %c0_i32_22, %c0_i32_23] : memref<2x32x128xbf16, #tpu.memory_space<vmem>> -> memref<1x32x128xbf16, #tpu.memory_space<vmem>>
    %30 = tpu.memref_squeeze %29 : memref<1x32x128xbf16, #tpu.memory_space<vmem>> -> memref<32x128xbf16, #tpu.memory_space<vmem>>
    %c9 = arith.constant 9 : index
    %c0_24 = arith.constant 0 : index
    %31 = vector.load %30[%c9, %c0_24] : memref<32x128xbf16, #tpu.memory_space<vmem>>, vector<16x128xbf16>
    %c0_25 = arith.constant 0 : index
    %c2 = arith.constant 2 : index
    %c0_26 = arith.constant 0 : index
    %c0_27 = arith.constant 0 : index
    %32 = vector.load %arg4[%c0_25, %c2, %c0_26, %c0_27] : memref<1x3x128x256xbf16, #tpu.memory_space<vmem>>, vector<1x1x128x256xbf16>
    %33 = vector.shape_cast %32 : vector<1x1x128x256xbf16> to vector<128x256xbf16>
    %cst_28 = arith.constant dense<0.000000e+00> : vector<16x256xf32>
    %34 = tpu.matmul %31, %33, %cst_28 {dimension_numbers = #tpu.dot_dimension_numbers<[1], [0], [0], [1], [0, 0, 1, 1], [], []>} : vector<16x128xbf16>, vector<128x256xbf16>, vector<16x256xf32> -> vector<16x256xf32>
    %35 = arith.addf %28, %34 : vector<16x256xf32>
    %36 = vector.broadcast %15 : vector<1x256xf32> to vector<16x256xf32>
    %37 = arith.addf %35, %36 : vector<16x256xf32>
    %38 = vector.extract_strided_slice %37 {offsets = [0, 0], sizes = [16, 128], strides = [1, 1]} : vector<16x256xf32> to vector<16x128xf32>
    %39 = vector.extract_strided_slice %37 {offsets = [0, 128], sizes = [16, 128], strides = [1, 1]} : vector<16x256xf32> to vector<16x128xf32>
    %40 = arith.negf %39 : vector<16x128xf32>
    %41 = math.exp %40 : vector<16x128xf32>
    %cst_29 = arith.constant 1.000000e+00 : f32
    %42 = vector.broadcast %cst_29 : f32 to vector<16x128xf32>
    %43 = arith.addf %42, %41 : vector<16x128xf32>
    %44 = arith.divf %42, %43 : vector<16x128xf32>
    %45 = arith.mulf %38, %44 : vector<16x128xf32>
    %c0_i32_30 = arith.constant 0 : i32
    %c0_i32_31 = arith.constant 0 : i32
    %46 = tpu.memref_slice %arg9[%9, %c0_i32_30, %c0_i32_31] : memref<2x32x128xbf16, #tpu.memory_space<vmem>> -> memref<1x32x128xbf16, #tpu.memory_space<vmem>>
    %47 = tpu.memref_squeeze %46 : memref<1x32x128xbf16, #tpu.memory_space<vmem>> -> memref<32x128xbf16, #tpu.memory_space<vmem>>
    %c8_32 = arith.constant 8 : index
    %c0_33 = arith.constant 0 : index
    %48 = vector.load %47[%c8_32, %c0_33] : memref<32x128xbf16, #tpu.memory_space<vmem>>, vector<16x128xbf16>
    %49 = arith.extf %48 : vector<16x128xbf16> to vector<16x128xf32>
    %50 = arith.addf %45, %49 : vector<16x128xf32>
    %cst_34 = arith.constant 0.707106769 : f32
    %51 = vector.broadcast %cst_34 : f32 to vector<16x128xf32>
    %52 = arith.mulf %50, %51 : vector<16x128xf32>
    %c2_i32_35 = arith.constant 2 : i32
    %53 = arith.cmpi slt, %arg1, %c2_i32_35 : i32
    %54 = arith.extui %53 : i1 to i32
    %c0_i32_36 = arith.constant 0 : i32
    %55 = arith.cmpi ne, %54, %c0_i32_36 : i32
    scf.if %55 {
      %59 = arith.truncf %52 : vector<16x128xf32> to vector<16x128xbf16>
      %c0_i32_39 = arith.constant 0 : i32
      %c0_i32_40 = arith.constant 0 : i32
      %60 = tpu.memref_slice %arg9[%10, %c0_i32_39, %c0_i32_40] : memref<2x32x128xbf16, #tpu.memory_space<vmem>> -> memref<1x32x128xbf16, #tpu.memory_space<vmem>>
      %61 = tpu.memref_squeeze %60 : memref<1x32x128xbf16, #tpu.memory_space<vmem>> -> memref<32x128xbf16, #tpu.memory_space<vmem>>
      %c8_41 = arith.constant 8 : index
      %c0_42 = arith.constant 0 : index
      %62 = vector.load %61[%c8_41, %c0_42] : memref<32x128xbf16, #tpu.memory_space<vmem>>, vector<16x128xbf16>
      tpu.vector_store %61[%c8_41, %c0_42], %59 {strides = array<i32>} : memref<32x128xbf16, #tpu.memory_space<vmem>>, vector<16x128xbf16>,
    } else {
    }
    %c2_i32_37 = arith.constant 2 : i32
    %56 = arith.cmpi eq, %arg1, %c2_i32_37 : i32
    %57 = arith.extui %56 : i1 to i32
    %c0_i32_38 = arith.constant 0 : i32
    %58 = arith.cmpi ne, %57, %c0_i32_38 : i32
    scf.if %58 {
      %59 = arith.truncf %52 : vector<16x128xf32> to vector<16x128xbf16>
      %c0_39 = arith.constant 0 : index
      %c0_40 = arith.constant 0 : index
      %60 = vector.load %arg6[%c0_39, %c0_40] : memref<128x128xbf16, #tpu.memory_space<vmem>>, vector<128x128xbf16>
      %cst_41 = arith.constant dense<0.000000e+00> : vector<16x128xf32>
      %61 = tpu.matmul %59, %60, %cst_41 {dimension_numbers = #tpu.dot_dimension_numbers<[1], [0], [0], [1], [0, 0, 1, 1], [], []>} : vector<16x128xbf16>, vector<128x128xbf16>, vector<16x128xf32> -> vector<16x128xf32>
      %c0_42 = arith.constant 0 : index
      %c0_43 = arith.constant 0 : index
      %62 = vector.load %arg7[%c0_42, %c0_43] : memref<1x128xf32, #tpu.memory_space<vmem>>, vector<1x128xf32>
      %63 = vector.broadcast %62 : vector<1x128xf32> to vector<16x128xf32>
      %64 = arith.addf %61, %63 : vector<16x128xf32>
      %c0_44 = arith.constant 0 : index
      %c0_45 = arith.constant 0 : index
      %c0_46 = arith.constant 0 : index
      %65 = vector.load %arg3[%c0_44, %c0_45, %c0_46] : memref<1x16x128xf32, #tpu.memory_space<vmem>>, vector<1x16x128xf32>
      %66 = vector.shape_cast %65 : vector<1x16x128xf32> to vector<16x128xf32>
      %67 = arith.addf %64, %66 : vector<16x128xf32>
      %cst_47 = arith.constant 0.707106769 : f32
      %68 = vector.broadcast %cst_47 : f32 to vector<16x128xf32>
      %69 = arith.mulf %67, %68 : vector<16x128xf32>
      %c0_48 = arith.constant 0 : index
      %c0_49 = arith.constant 0 : index
      %c0_50 = arith.constant 0 : index
      %70 = vector.load %arg8[%c0_48, %c0_49, %c0_50] : memref<1x16x128xf32, #tpu.memory_space<vmem>>, vector<1x16x128xf32>
      %71 = vector.shape_cast %70 : vector<1x16x128xf32> to vector<16x128xf32>
      %72 = vector.shape_cast %69 : vector<16x128xf32> to vector<1x16x128xf32>
      tpu.vector_store %arg8[%c0_48, %c0_49, %c0_50], %72 {strides = array<i32>} : memref<1x16x128xf32, #tpu.memory_space<vmem>>, vector<1x16x128xf32>,
    } else {
    }
    return
  }
  func.func @transform_0(%arg0: i32, %arg1: i32) -> (i32, i32, i32) {
    %c0_i32 = arith.constant 0 : i32
    %c0_i32_0 = arith.constant 0 : i32
    %c0_i32_1 = arith.constant 0 : i32
    return %arg0, %c0_i32, %c0_i32_0 : i32, i32, i32
  }
  func.func @transform_1(%arg0: i32, %arg1: i32) -> (i32, i32, i32) {
    %c0_i32 = arith.constant 0 : i32
    %c0_i32_0 = arith.constant 0 : i32
    %c0_i32_1 = arith.constant 0 : i32
    return %arg0, %c0_i32, %c0_i32_0 : i32, i32, i32
  }
  func.func @transform_2(%arg0: i32, %arg1: i32) -> (i32, i32, i32, i32) {
    %c0_i32 = arith.constant 0 : i32
    %c0_i32_0 = arith.constant 0 : i32
    %c0_i32_1 = arith.constant 0 : i32
    %c0_i32_2 = arith.constant 0 : i32
    return %arg1, %c0_i32, %c0_i32_0, %c0_i32_1 : i32, i32, i32, i32
  }
  func.func @transform_3(%arg0: i32, %arg1: i32) -> (i32, i32, i32) {
    %c0_i32 = arith.constant 0 : i32
    %c0_i32_0 = arith.constant 0 : i32
    %c0_i32_1 = arith.constant 0 : i32
    return %arg1, %c0_i32, %c0_i32_0 : i32, i32, i32
  }
  func.func @transform_4(%arg0: i32, %arg1: i32) -> (i32, i32) {
    %c0_i32 = arith.constant 0 : i32
    %c0_i32_0 = arith.constant 0 : i32
    %c0_i32_1 = arith.constant 0 : i32
    return %c0_i32, %c0_i32_0 : i32, i32
  }
  func.func @transform_5(%arg0: i32, %arg1: i32) -> (i32, i32) {
    %c0_i32 = arith.constant 0 : i32
    %c0_i32_0 = arith.constant 0 : i32
    %c0_i32_1 = arith.constant 0 : i32
    return %c0_i32, %c0_i32_0 : i32, i32
  }
  func.func @transform_6(%arg0: i32, %arg1: i32) -> (i32, i32, i32) {
    %c0_i32 = arith.constant 0 : i32
    %c0_i32_0 = arith.constant 0 : i32
    %c0_i32_1 = arith.constant 0 : i32
    return %arg0, %c0_i32, %c0_i32_0 : i32, i32, i32
  }
}

</mosaic_0001>

<llo_original>
// kernel: encoder_forward.2
$region0: #{encoder_forward.2}
  #allocation0 [shape = 'u32[]', space=smem, size = 0x4, offset = 0x4, fixed_abs, tag = 'smem constant byte address 0x4 - core index']
  #allocation1 [shape = 'u32[144,128]{1,0:T(1,128)}', space=vmem, size = 0x12000, scoped, tag = 'internal scratch']
  %s0 = inlined_call_operand.vmem [shape: s32[32,1], index: 0, kind: input, shape index: {}]
  %s1 = inlined_call_operand.vmem [shape: bf16[64,128], index: 1, kind: input, shape index: {}]
  %s2 = inlined_call_operand.vmem [shape: bf16[128,128], index: 2, kind: input, shape index: {}]
  %s3 = inlined_call_operand.hbm [shape: f32[1,128], index: 3, kind: input, shape index: {}]
  %s4 = inlined_call_operand.vmem [shape: f32[32,128], index: 4, kind: output, shape index: {0}]
  %s5 = inlined_call_operand.vmem [shape: f32[32,128], index: 5, kind: output, shape index: {1}]
  %6 = xla_tuple %s4, %s5
  %s7 = sld [smem:[#allocation0]]
  $region38: #{encoder_forward.2} parent=0
    _
  %s9 = ssub.s32 1, %s7
  %s10 = scalar_select 0, %s9, %s7
  $region1: #{encoder_forward.2} parent=0
    #allocation2 [shape = 'u8[512]{0}', space=vmem, size = 0x400, scoped, tag = 'input window, operand 3, single buffered']
    #allocation3 [shape = 's32[1]{0}', space=sflag, size = 0x4, scoped, tag = 'scoped memory for encoder_forward.2']
    %11 = vsyncpa [#allocation3], 0
    // Predicated region
    $region2: #{encoder_forward.2} parent=1 // pred_check
      _
    $region3: #{encoder_forward.2} parent=1 // pred_check_branch
      %13 = sbr.rel (0) target = $region5
    $region4: #{encoder_forward.2} parent=1 // pred_region
      _
    $region5: #{encoder_forward.2} parent=1 // pred_fallthru
      _
    // Predicated region
    $region6: #{encoder_forward.2} parent=1 // pred_check
      _
    $region7: #{encoder_forward.2} parent=1 // pred_check_branch
      %15 = sbr.rel (0) target = $region9
    $region8: #{encoder_forward.2} parent=1 // pred_region
      _
    $region9: #{encoder_forward.2} parent=1 // pred_fallthru
      _
    // Predicated region
    $region10: #{encoder_forward.2} parent=1 // pred_check
      _
    $region11: #{encoder_forward.2} parent=1 // pred_check_branch
      %17 = sbr.rel (0) target = $region13
    $region12: #{encoder_forward.2} parent=1 // pred_region
      _
    $region13: #{encoder_forward.2} parent=1 // pred_fallthru
      _
    // Predicated region
    $region14: #{encoder_forward.2} parent=1 // pred_check
      _
    $region15: #{encoder_forward.2} parent=1 // pred_check_branch
      %19 = sbr.rel (0) target = $region17
    $region16: #{encoder_forward.2} parent=1 // pred_region
      %s21 = ssub.s32 16, 16
      %22 = vsyncadd [#allocation3], %s21
      %s24 = sshll.u32 [#allocation2], 4
      %s25 = int_to_ptr.vmem [resolvable:$true] %s24
      %27 = dma.hbm_to_vmem [thread:$0]  %s3, 16, %s25, [#allocation3]
    $region17: #{encoder_forward.2} parent=1 // pred_fallthru
      _
    // Predicated region
    $region18: #{encoder_forward.2} parent=1 // pred_check
      _
    $region19: #{encoder_forward.2} parent=1 // pred_check_branch
      %29 = sbr.rel (0) target = $region21
    $region20: #{encoder_forward.2} parent=1 // pred_region
      %30 = dma.done [#allocation3], 16
    $region21: #{encoder_forward.2} parent=1 // pred_fallthru
      _
    %v32 = vld [vmem:[%s0] sm:$0xff]
    %v33 = vld [vmem:[%s0 + $0x8] sm:$0xff]
    %v34 = vld [vmem:[%s0 + $0x10] sm:$0xff]
    %v35 = vld [vmem:[%s0 + $0x18] sm:$0xff]
    %v36 = vlaneseq
    %v37 = vand.u32 %v36, 127
    %38 = vset.pattern.permute.xlu0 0
    %39 = vperm.xlu0 %38, %v32
    %v40 = vpop.permute.xlu0 %39
    %41 = vset.pattern.permute.xlu0 0
    %42 = vperm.xlu0 %41, %v33
    %v43 = vpop.permute.xlu0 %42
    %44 = vset.pattern.permute.xlu0 0
    %45 = vperm.xlu0 %44, %v34
    %v46 = vpop.permute.xlu0 %45
    %47 = vset.pattern.permute.xlu0 0
    %48 = vperm.xlu0 %47, %v35
    %v49 = vpop.permute.xlu0 %48
    %vm50 = vcmp.eq.s32.totalorder %v37, %v40
    %vm51 = vcmp.eq.s32.totalorder %v37, %v43
    %vm52 = vcmp.eq.s32.totalorder %v37, %v46
    %vm53 = vcmp.eq.s32.totalorder %v37, %v49
    %v54 = vsel %vm50, 1, 0
    %v55 = vsel %vm51, 1, 0
    %v56 = vsel %vm52, 1, 0
    %v57 = vsel %vm53, 1, 0
    %v58 = vcvt.s32.f32 %v54
    %v59 = vcvt.s32.f32 %v55
    %v60 = vcvt.s32.f32 %v56
    %v61 = vcvt.s32.f32 %v57
    %v62 = vpack.c.bf16 %v59, %v58
    %v63 = vpack.c.bf16 %v61, %v60
    %v64 = vld [vmem:[%s1] sm:$0xf]
    %v65 = vld [vmem:[%s1 + $0x4] sm:$0xf]
    %v66 = vld [vmem:[%s1 + $0x8] sm:$0xf]
    %v67 = vld [vmem:[%s1 + $0xc] sm:$0xf]
    %v68 = vld [vmem:[%s1 + $0x10] sm:$0xf]
    %v69 = vld [vmem:[%s1 + $0x14] sm:$0xf]
    %v70 = vld [vmem:[%s1 + $0x18] sm:$0xf]
    %v71 = vld [vmem:[%s1 + $0x1c] sm:$0xf]
    %v80 = vunpack.c.l.b16 %v64
    %v81 = vunpack.c.l.b16 %v65
    %v82 = vunpack.c.l.b16 %v66
    %v83 = vunpack.c.l.b16 %v67
    %v84 = vunpack.c.l.b16 %v68
    %v85 = vunpack.c.l.b16 %v69
    %v86 = vunpack.c.l.b16 %v70
    %v87 = vunpack.c.l.b16 %v71
    %v88 = vpack.c.b16 %v81, %v80
    %v89 = vpack.c.b16 %v83, %v82
    %v90 = vpack.c.b16 %v85, %v84
    %v91 = vpack.c.b16 %v87, %v86
    %vm96 = vcmask 523264
    %v98 = vsel %vm96, %v62, 0
    %v101 = vsel %vm96, %v63, 0
    %103 = vmatprep.subr.bf16.mxu0 0
    %104 = vmatpush1.bf16.msra.mxu0 %v88
    %105 = vmatprep.subr.bf16.mxu0 0
    %106 = vmatpush1.bf16.msra.mxu0 %v89
    %107 = vmatprep.subr.bf16.mxu0 0
    %108 = vmatpush1.bf16.msra.mxu0 %v90
    %109 = vmatprep.subr.bf16.mxu0 0
    %110 = vmatpush1.bf16.msra.mxu0 %v91
    %111 = vmatprep.subr.bf16.mxu0 0
    %112 = vmatpush1.bf16.msra.mxu0 0
    %113 = vmatprep.subr.bf16.mxu0 0
    %114 = vmatpush1.bf16.msra.mxu0 0
    %115 = vmatprep.subr.bf16.mxu0 0
    %116 = vmatpush1.bf16.msra.mxu0 0
    %117 = vmatprep.subr.bf16.mxu0 0
    %118 = vmatpush1.bf16.msra.mxu0 0
    %119 = vmatprep.subr.bf16.mxu0 0
    %120 = vmatpush1.bf16.msra.mxu0 0
    %121 = vmatprep.subr.bf16.mxu0 0
    %122 = vmatpush1.bf16.msra.mxu0 0
    %123 = vmatprep.subr.bf16.mxu0 0
    %124 = vmatpush1.bf16.msra.mxu0 0
    %125 = vmatprep.subr.bf16.mxu0 0
    %126 = vmatpush1.bf16.msra.mxu0 0
    %127 = vmatprep.subr.bf16.mxu0 0
    %128 = vmatpush1.bf16.msra.mxu0 0
    %129 = vmatprep.subr.bf16.mxu0 0
    %130 = vmatpush1.bf16.msra.mxu0 0
    %131 = vmatprep.subr.bf16.mxu0 0
    %132 = vmatpush1.bf16.msra.mxu0 0
    %133 = vmatprep.subr.bf16.mxu0 0
    %134 = vmatpush1.bf16.msra.mxu0 0
    %135 = vmatprep.mubr.bf16.mxu0 0
    %136 = vmatmul.mubr.bf16.gmra.mrb[0].mxu0 %v98
    %v137 = vpop.f32.mrb[0].mxu0
    %v138 = vadd.f32 0.0, %v137
    %v139 = vpop.f32.mrb[0].mxu0
    %v140 = vpop.f32.mrb[0].mxu0
    %v141 = vadd.f32 0.0, %v140
    %v142 = vpop.f32.mrb[0].mxu0
    %143 = vmatprep.mubr.bf16.mxu0 0
    %144 = vmatmul.mubr.bf16.gmra.mrb[0].mxu0 %v101
    %v145 = vpop.f32.mrb[0].mxu0
    %v146 = vadd.f32 0.0, %v145
    %v147 = vpop.f32.mrb[0].mxu0
    %v148 = vpop.f32.mrb[0].mxu0
    %v149 = vadd.f32 0.0, %v148
    %v150 = vpop.f32.mrb[0].mxu0
    %151 = vdwg.mxu0
    %152 = vst [vmem:[%s4] sm:$0xff] %v138
    %153 = vst [vmem:[%s4 + $0x8] sm:$0xff] %v141
    %154 = vst [vmem:[%s4 + $0x10] sm:$0xff] %v146
    %155 = vst [vmem:[%s4 + $0x18] sm:$0xff] %v149
    %v156 = vpack.c.bf16 %v141, %v138
    %v157 = vpack.c.bf16 %v149, %v146
    %v158 = vld [vmem:[%s2] sm:$0xf]
    %v159 = vld [vmem:[%s2 + $0x4] sm:$0xf]
    %v160 = vld [vmem:[%s2 + $0x8] sm:$0xf]
    %v161 = vld [vmem:[%s2 + $0xc] sm:$0xf]
    %v162 = vld [vmem:[%s2 + $0x10] sm:$0xf]
    %v163 = vld [vmem:[%s2 + $0x14] sm:$0xf]
    %v164 = vld [vmem:[%s2 + $0x18] sm:$0xf]
    %v165 = vld [vmem:[%s2 + $0x1c] sm:$0xf]
    %v166 = vld [vmem:[%s2 + $0x20] sm:$0xf]
    %v167 = vld [vmem:[%s2 + $0x24] sm:$0xf]
    %v168 = vld [vmem:[%s2 + $0x28] sm:$0xf]
    %v169 = vld [vmem:[%s2 + $0x2c] sm:$0xf]
    %v170 = vld [vmem:[%s2 + $0x30] sm:$0xf]
    %v171 = vld [vmem:[%s2 + $0x34] sm:$0xf]
    %v172 = vld [vmem:[%s2 + $0x38] sm:$0xf]
    %v173 = vld [vmem:[%s2 + $0x3c] sm:$0xf]
    %v174 = vld [vmem:[#allocation2] sm:$0x1]
    %v176 = vlaneseq
    %v177 = vshrl.u32 %v176, 7
    %v178 = vsub.s32 0, %v177
    %v179 = vrot.slane %v174, %v178
    %v197 = vunpack.c.l.b16 %v158
    %v198 = vunpack.c.l.b16 %v159
    %v199 = vunpack.c.l.b16 %v160
    %v200 = vunpack.c.l.b16 %v161
    %v201 = vunpack.c.l.b16 %v162
    %v202 = vunpack.c.l.b16 %v163
    %v203 = vunpack.c.l.b16 %v164
    %v204 = vunpack.c.l.b16 %v165
    %v205 = vunpack.c.l.b16 %v166
    %v206 = vunpack.c.l.b16 %v167
    %v207 = vunpack.c.l.b16 %v168
    %v208 = vunpack.c.l.b16 %v169
    %v209 = vunpack.c.l.b16 %v170
    %v210 = vunpack.c.l.b16 %v171
    %v211 = vunpack.c.l.b16 %v172
    %v212 = vunpack.c.l.b16 %v173
    %v213 = vpack.c.b16 %v198, %v197
    %v214 = vpack.c.b16 %v200, %v199
    %v215 = vpack.c.b16 %v202, %v201
    %v216 = vpack.c.b16 %v204, %v203
    %v217 = vpack.c.b16 %v206, %v205
    %v218 = vpack.c.b16 %v208, %v207
    %v219 = vpack.c.b16 %v210, %v209
    %v220 = vpack.c.b16 %v212, %v211
    %229 = vmatprep.subr.bf16.mxu0 0
    %230 = vmatpush1.bf16.msra.mxu0 %v213
    %231 = vmatprep.subr.bf16.mxu0 0
    %232 = vmatpush1.bf16.msra.mxu0 %v214
    %233 = vmatprep.subr.bf16.mxu0 0
    %234 = vmatpush1.bf16.msra.mxu0 %v215
    %235 = vmatprep.subr.bf16.mxu0 0
    %236 = vmatpush1.bf16.msra.mxu0 %v216
    %237 = vmatprep.subr.bf16.mxu0 0
    %238 = vmatpush1.bf16.msra.mxu0 %v217
    %239 = vmatprep.subr.bf16.mxu0 0
    %240 = vmatpush1.bf16.msra.mxu0 %v218
    %241 = vmatprep.subr.bf16.mxu0 0
    %242 = vmatpush1.bf16.msra.mxu0 %v219
    %243 = vmatprep.subr.bf16.mxu0 0
    %244 = vmatpush1.bf16.msra.mxu0 %v220
    %245 = vmatprep.subr.bf16.mxu0 0
    %246 = vmatpush1.bf16.msra.mxu0 0
    %247 = vmatprep.subr.bf16.mxu0 0
    %248 = vmatpush1.bf16.msra.mxu0 0
    %249 = vmatprep.subr.bf16.mxu0 0
    %250 = vmatpush1.bf16.msra.mxu0 0
    %251 = vmatprep.subr.bf16.mxu0 0
    %252 = vmatpush1.bf16.msra.mxu0 0
    %253 = vmatprep.subr.bf16.mxu0 0
    %254 = vmatpush1.bf16.msra.mxu0 0
    %255 = vmatprep.subr.bf16.mxu0 0
    %256 = vmatpush1.bf16.msra.mxu0 0
    %257 = vmatprep.subr.bf16.mxu0 0
    %258 = vmatpush1.bf16.msra.mxu0 0
    %259 = vmatprep.subr.bf16.mxu0 0
    %260 = vmatpush1.bf16.msra.mxu0 0
    %261 = vmatprep.mubr.bf16.mxu0 0
    %262 = vmatmul.mubr.bf16.gmra.mrb[0].mxu0 %v156
    %v263 = vpop.f32.mrb[0].mxu0
    %v264 = vadd.f32 %v179, %v263
    %v265 = vpop.f32.mrb[0].mxu0
    %v266 = vpop.f32.mrb[0].mxu0
    %v267 = vadd.f32 %v179, %v266
    %v268 = vpop.f32.mrb[0].mxu0
    %269 = vmatprep.mubr.bf16.mxu0 0
    %270 = vmatmul.mubr.bf16.gmra.mrb[0].mxu0 %v157
    %v271 = vpop.f32.mrb[0].mxu0
    %v272 = vadd.f32 %v179, %v271
    %v273 = vpop.f32.mrb[0].mxu0
    %v274 = vpop.f32.mrb[0].mxu0
    %v275 = vadd.f32 %v179, %v274
    %v276 = vpop.f32.mrb[0].mxu0
    %277 = vdwg.mxu0
    %278 = vst [vmem:[%s5] sm:$0xff] %v264
    %279 = vst [vmem:[%s5 + $0x8] sm:$0xff] %v267
    %280 = vst [vmem:[%s5 + $0x10] sm:$0xff] %v272
    %281 = vst [vmem:[%s5 + $0x18] sm:$0xff] %v275
    // Predicated region
    $region22: #{encoder_forward.2} parent=1 // pred_check
      _
    $region23: #{encoder_forward.2} parent=1 // pred_check_branch
      %283 = sbr.rel (0) target = $region25
    $region24: #{encoder_forward.2} parent=1 // pred_region
      _
    $region25: #{encoder_forward.2} parent=1 // pred_fallthru
      _
    // Predicated region
    $region26: #{encoder_forward.2} parent=1 // pred_check
      _
    $region27: #{encoder_forward.2} parent=1 // pred_check_branch
      %285 = sbr.rel (0) target = $region29
    $region28: #{encoder_forward.2} parent=1 // pred_region
      _
    $region29: #{encoder_forward.2} parent=1 // pred_fallthru
      _
    // Predicated region
    $region30: #{encoder_forward.2} parent=1 // pred_check
      _
    $region31: #{encoder_forward.2} parent=1 // pred_check_branch
      %287 = sbr.rel (0) target = $region33
    $region32: #{encoder_forward.2} parent=1 // pred_region
      _
    $region33: #{encoder_forward.2} parent=1 // pred_fallthru
      _
    // Predicated region
    $region34: #{encoder_forward.2} parent=1 // pred_check
      _
    $region35: #{encoder_forward.2} parent=1 // pred_check_branch
      %289 = sbr.rel (0) target = $region37
    $region36: #{encoder_forward.2} parent=1 // pred_region
      _
    $region37: #{encoder_forward.2} parent=1 // pred_fallthru
      _
    %290 = vsyncpa [#allocation3], 1

// kernel: encoder_forward.3
$region0: #{encoder_forward.3}
  #allocation0 [shape = 'u32[]', space=smem, size = 0x4, offset = 0x4, fixed_abs, tag = 'smem constant byte address 0x4 - core index']
  #allocation1 [shape = 'u32[144,128]{1,0:T(1,128)}', space=vmem, size = 0x12000, scoped, tag = 'internal scratch']
  #allocation2 [shape = 'bf16[2,32,128]{2,1,0:T(16,128)(2,1)}', space=vmem, size = 0x4000, scoped, tag = 'scratch operand']
  %s0 = inlined_call_operand.vmem [shape: f32[2,16,128], index: 0, kind: input, shape index: {}]
  %s1 = inlined_call_operand.vmem [shape: f32[2,16,128], index: 1, kind: input, shape index: {}]
  %s2 = inlined_call_operand.vmem [shape: bf16[3,3,128,256], index: 2, kind: input, shape index: {}]
  %s3 = inlined_call_operand.vmem [shape: f32[3,1,256], index: 3, kind: input, shape index: {}]
  %s4 = inlined_call_operand.vmem [shape: bf16[128,128], index: 4, kind: input, shape index: {}]
  %s5 = inlined_call_operand.vmem [shape: f32[1,128], index: 5, kind: input, shape index: {}]
  %s6 = inlined_call_operand.vmem [shape: f32[2,16,128], index: 6, kind: output, shape index: {}]
  %s7 = sld [smem:[#allocation0]]
  $region69: #{encoder_forward.3} parent=0
    _
  %s9 = ssub.s32 1, %s7
  %s10 = scalar_select 0, %s9, %s7
  loop: start=0, step=1, limit=8
  $region2: #{encoder_forward.3} parent=0 // loop_pre_header
    _
  $region3: #{encoder_forward.3} parent=0 // loop_header
    %s12 = sphi 0, %s16
    %p13 = scmp.ge.s32.totalorder %s12, 8
    %s19 = sphi 0, %s31
    %s20 = sphi 0, %s27
    %s21 = sphi 0, %s19
    %s22 = sphi 0, %s20
    %s23 = sphi 0, %s21
    %s24 = sphi 0, %s22
    %s34 = sphi 0, %s36
    %s37 = sphi 0, %s34
    %s38 = sphi 0, %s37
    %s54 = sphi 0, %s38
    %s60 = sphi 0, %s62
    %s63 = sphi 0, %s60
    %s64 = sphi 0, %s63
    %s80 = sphi 0, %s64
    %s86 = sphi 0, %s88
    %s89 = sphi 0, %s86
    %s90 = sphi 0, %s89
    %s106 = sphi 0, %s90
    %s112 = sphi 0, %s114
    %s115 = sphi 0, %s112
    %s116 = sphi 0, %s115
    %s132 = sphi 0, %s116
    %s136 = sphi 0, %s136
    %s138 = sphi 0, %s136
    %s139 = sphi 0, %s138
    %s153 = sphi 0, %s139
    %s157 = sphi 0, %s157
    %s159 = sphi 0, %s157
    %s160 = sphi 0, %s159
    %s174 = sphi 0, %s160
    %s180 = sphi 0, %s182
    %s183 = sphi 0, %s180
    %s184 = sphi 0, %s183
    %s200 = sphi 0, %s184
  $region4: #{encoder_forward.3} parent=0 // loop_header_branch
    %15 = sbr.rel (%p13) target = $region8
  $region5: #{encoder_forward.3} parent=0 // loop_body
    %s17 = ssub.s32 %s12, 1
    %s18 = ssub.s32 %s12, 2
    %s25 = sadd.s32 1, %s20
    %p26 = scmp.ge.s32.totalorder %s25, 3
    %s27 = scalar_select %p26, 0, %s25
    %s28 = sadd.s32 1, %s19
    %s29 = scalar_select %p26, %s28, %s19
    %p30 = scmp.ge.s32.totalorder %s29, 2
    %s31 = scalar_select %p30, 0, %s29
    %s32 = ssub.s32 %s19, %s31
    %p33 = scmp.eq.s32.totalorder %s32, 0
    %s35 = sadd.s32 %s34, 1
    %s36 = scalar_select %p33, %s34, %s35
    %p39 = pneg %p33
    %p40 = scmp.eq.s32.totalorder %s12, 5
    %p41 = por %p39, %p40
    %p42 = scmp.ne.s32.totalorder %s34, %s37
    %p43 = scmp.eq.s32.totalorder %s12, 0
    %p44 = por %p42, %p43
    %p45 = scmp.ne.s32.totalorder %s34, %s37
    %p46 = scmp.eq.s32.totalorder %s17, 5
    %p47 = por %p45, %p46
    %p48 = scmp.ne.s32.totalorder %s37, %s38
    %p49 = scmp.eq.s32.totalorder %s17, 0
    %p50 = por %p48, %p49
    %p51 = scmp.ne.s32.totalorder %s37, %s38
    %p52 = scmp.eq.s32.totalorder %s18, 5
    %p53 = por %p51, %p52
    %p55 = scmp.ne.s32.totalorder %s38, %s54
    %p56 = scmp.eq.s32.totalorder %s18, 0
    %p57 = por %p55, %p56
    %s58 = ssub.s32 %s19, %s31
    %p59 = scmp.eq.s32.totalorder %s58, 0
    %s61 = sadd.s32 %s60, 1
    %s62 = scalar_select %p59, %s60, %s61
    %p65 = pneg %p59
    %p66 = scmp.eq.s32.totalorder %s12, 5
    %p67 = por %p65, %p66
    %p68 = scmp.ne.s32.totalorder %s60, %s63
    %p69 = scmp.eq.s32.totalorder %s12, 0
    %p70 = por %p68, %p69
    %p71 = scmp.ne.s32.totalorder %s60, %s63
    %p72 = scmp.eq.s32.totalorder %s17, 5
    %p73 = por %p71, %p72
    %p74 = scmp.ne.s32.totalorder %s63, %s64
    %p75 = scmp.eq.s32.totalorder %s17, 0
    %p76 = por %p74, %p75
    %p77 = scmp.ne.s32.totalorder %s63, %s64
    %p78 = scmp.eq.s32.totalorder %s18, 5
    %p79 = por %p77, %p78
    %p81 = scmp.ne.s32.totalorder %s64, %s80
    %p82 = scmp.eq.s32.totalorder %s18, 0
    %p83 = por %p81, %p82
    %s84 = ssub.s32 %s20, %s27
    %p85 = scmp.eq.s32.totalorder %s84, 0
    %s87 = sadd.s32 %s86, 1
    %s88 = scalar_select %p85, %s86, %s87
    %p91 = pneg %p85
    %p92 = scmp.eq.s32.totalorder %s12, 5
    %p93 = por %p91, %p92
    %p94 = scmp.ne.s32.totalorder %s86, %s89
    %p95 = scmp.eq.s32.totalorder %s12, 0
    %p96 = por %p94, %p95
    %p97 = scmp.ne.s32.totalorder %s86, %s89
    %p98 = scmp.eq.s32.totalorder %s17, 5
    %p99 = por %p97, %p98
    %p100 = scmp.ne.s32.totalorder %s89, %s90
    %p101 = scmp.eq.s32.totalorder %s17, 0
    %p102 = por %p100, %p101
    %p103 = scmp.ne.s32.totalorder %s89, %s90
    %p104 = scmp.eq.s32.totalorder %s18, 5
    %p105 = por %p103, %p104
    %p107 = scmp.ne.s32.totalorder %s90, %s106
    %p108 = scmp.eq.s32.totalorder %s18, 0
    %p109 = por %p107, %p108
    %s110 = ssub.s32 %s20, %s27
    %p111 = scmp.eq.s32.totalorder %s110, 0
    %s113 = sadd.s32 %s112, 1
    %s114 = scalar_select %p111, %s112, %s113
    %p117 = pneg %p111
    %p118 = scmp.eq.s32.totalorder %s12, 5
    %p119 = por %p117, %p118
    %p120 = scmp.ne.s32.totalorder %s112, %s115
    %p121 = scmp.eq.s32.totalorder %s12, 0
    %p122 = por %p120, %p121
    %p123 = scmp.ne.s32.totalorder %s112, %s115
    %p124 = scmp.eq.s32.totalorder %s17, 5
    %p125 = por %p123, %p124
    %p126 = scmp.ne.s32.totalorder %s115, %s116
    %p127 = scmp.eq.s32.totalorder %s17, 0
    %p128 = por %p126, %p127
    %p129 = scmp.ne.s32.totalorder %s115, %s116
    %p130 = scmp.eq.s32.totalorder %s18, 5
    %p131 = por %p129, %p130
    %p133 = scmp.ne.s32.totalorder %s116, %s132
    %p134 = scmp.eq.s32.totalorder %s18, 0
    %p135 = por %p133, %p134
    %s137 = sadd.s32 %s136, 1
    %p140 = scmp.eq.s32.totalorder %s12, 5
    %p141 = scmp.ne.s32.totalorder %s136, %s138
    %p142 = scmp.eq.s32.totalorder %s12, 0
    %p143 = por %p141, %p142
    %p144 = scmp.ne.s32.totalorder %s136, %s138
    %p145 = scmp.eq.s32.totalorder %s17, 5
    %p146 = por %p144, %p145
    %p147 = scmp.ne.s32.totalorder %s138, %s139
    %p148 = scmp.eq.s32.totalorder %s17, 0
    %p149 = por %p147, %p148
    %p150 = scmp.ne.s32.totalorder %s138, %s139
    %p151 = scmp.eq.s32.totalorder %s18, 5
    %p152 = por %p150, %p151
    %p154 = scmp.ne.s32.totalorder %s139, %s153
    %p155 = scmp.eq.s32.totalorder %s18, 0
    %p156 = por %p154, %p155
    %s158 = sadd.s32 %s157, 1
    %p161 = scmp.eq.s32.totalorder %s12, 5
    %p162 = scmp.ne.s32.totalorder %s157, %s159
    %p163 = scmp.eq.s32.totalorder %s12, 0
    %p164 = por %p162, %p163
    %p165 = scmp.ne.s32.totalorder %s157, %s159
    %p166 = scmp.eq.s32.totalorder %s17, 5
    %p167 = por %p165, %p166
    %p168 = scmp.ne.s32.totalorder %s159, %s160
    %p169 = scmp.eq.s32.totalorder %s17, 0
    %p170 = por %p168, %p169
    %p171 = scmp.ne.s32.totalorder %s159, %s160
    %p172 = scmp.eq.s32.totalorder %s18, 5
    %p173 = por %p171, %p172
    %p175 = scmp.ne.s32.totalorder %s160, %s174
    %p176 = scmp.eq.s32.totalorder %s18, 0
    %p177 = por %p175, %p176
    %s178 = ssub.s32 %s19, %s31
    %p179 = scmp.eq.s32.totalorder %s178, 0
    %s181 = sadd.s32 %s180, 1
    %s182 = scalar_select %p179, %s180, %s181
    %p185 = pneg %p179
    %p186 = scmp.eq.s32.totalorder %s12, 5
    %p187 = por %p185, %p186
    %p188 = scmp.ne.s32.totalorder %s180, %s183
    %p189 = scmp.eq.s32.totalorder %s12, 0
    %p190 = por %p188, %p189
    %p191 = scmp.ne.s32.totalorder %s180, %s183
    %p192 = scmp.eq.s32.totalorder %s17, 5
    %p193 = por %p191, %p192
    %p194 = scmp.ne.s32.totalorder %s183, %s184
    %p195 = scmp.eq.s32.totalorder %s17, 0
    %p196 = por %p194, %p195
    %p197 = scmp.ne.s32.totalorder %s183, %s184
    %p198 = scmp.eq.s32.totalorder %s18, 5
    %p199 = por %p197, %p198
    %p201 = scmp.ne.s32.totalorder %s184, %s200
    %p202 = scmp.eq.s32.totalorder %s18, 0
    %p203 = por %p201, %p202
    %p204 = scmp.le.s32.totalorder 1, %s12
    %p205 = scmp.lt.s32.totalorder %s12, 7
    %p206 = pnand %p204, %p205
    %p207 = pneg %p206
    // Predicated region
    $region9: #{encoder_forward.3} parent=5 // pred_check
      _
    $region10: #{encoder_forward.3} parent=5 // pred_check_branch
      %209 = sbr.rel (%p206) target = $region12
    $region11: #{encoder_forward.3} parent=5 // pred_region
      %s210 = ssub.s32 %s12, 1
      // Predicated region
      $region13: #{encoder_forward.3} parent=11 // pred_check
        %p211 = pneg %p149
      $region14: #{encoder_forward.3} parent=11 // pred_check_branch
        %213 = sbr.rel (%p211) target = $region16
      $region15: #{encoder_forward.3} parent=11 // pred_region
        _
      $region16: #{encoder_forward.3} parent=11 // pred_fallthru
        _
      // Predicated region
      $region17: #{encoder_forward.3} parent=11 // pred_check
        %p214 = pneg %p170
      $region18: #{encoder_forward.3} parent=11 // pred_check_branch
        %216 = sbr.rel (%p214) target = $region20
      $region19: #{encoder_forward.3} parent=11 // pred_region
        _
      $region20: #{encoder_forward.3} parent=11 // pred_fallthru
        _
    $region12: #{encoder_forward.3} parent=5 // pred_fallthru
      _
    %p217 = scmp.lt.s32.totalorder %s12, 6
    // Predicated region
    $region21: #{encoder_forward.3} parent=5 // pred_check
      %p218 = pneg %p217
    $region22: #{encoder_forward.3} parent=5 // pred_check_branch
      %220 = sbr.rel (%p218) target = $region24
    $region23: #{encoder_forward.3} parent=5 // pred_region
      // Predicated region
      $region25: #{encoder_forward.3} parent=23 // pred_check
        %p221 = pneg %p44
      $region26: #{encoder_forward.3} parent=23 // pred_check_branch
        %223 = sbr.rel (%p221) target = $region28
      $region27: #{encoder_forward.3} parent=23 // pred_region
        %p224 = scmp.lt.s32.totalorder %s19, 1
        %s225 = scalar_select %p224, %s19, 1
        %s226 = smul.addr %s225, 2
        %s227 = smul.addr %s226, 8
        %s228 = scalar_lea.vmem %s0, %s227
      $region28: #{encoder_forward.3} parent=23 // pred_fallthru
        _
      // Predicated region
      $region29: #{encoder_forward.3} parent=23 // pred_check
        %p229 = pneg %p70
      $region30: #{encoder_forward.3} parent=23 // pred_check_branch
        %231 = sbr.rel (%p229) target = $region32
      $region31: #{encoder_forward.3} parent=23 // pred_region
        %p232 = scmp.lt.s32.totalorder %s19, 1
        %s233 = scalar_select %p232, %s19, 1
        %s234 = smul.addr %s233, 2
        %s235 = smul.addr %s234, 8
        %s236 = scalar_lea.vmem %s1, %s235
      $region32: #{encoder_forward.3} parent=23 // pred_fallthru
        _
      // Predicated region
      $region33: #{encoder_forward.3} parent=23 // pred_check
        %p237 = pneg %p96
      $region34: #{encoder_forward.3} parent=23 // pred_check_branch
        %239 = sbr.rel (%p237) target = $region36
      $region35: #{encoder_forward.3} parent=23 // pred_region
        %p240 = scmp.lt.s32.totalorder %s20, 2
        %s241 = scalar_select %p240, %s20, 2
        %s242 = smul.addr %s241, 96
        %s243 = smul.addr %s242, 4
        %s244 = scalar_lea.vmem %s2, %s243
      $region36: #{encoder_forward.3} parent=23 // pred_fallthru
        _
      // Predicated region
      $region37: #{encoder_forward.3} parent=23 // pred_check
        %p245 = pneg %p122
      $region38: #{encoder_forward.3} parent=23 // pred_check_branch
        %247 = sbr.rel (%p245) target = $region40
      $region39: #{encoder_forward.3} parent=23 // pred_region
        %p248 = scmp.lt.s32.totalorder %s20, 2
        %s249 = scalar_select %p248, %s20, 2
        %s250 = smul.addr %s249, 2
        %s251 = scalar_lea.vmem %s3, %s250
      $region40: #{encoder_forward.3} parent=23 // pred_fallthru
        _
    $region24: #{encoder_forward.3} parent=5 // pred_fallthru
      _
    %p252 = scmp.le.s32.totalorder 1, %s12
    %p253 = scmp.lt.s32.totalorder %s12, 7
    %p254 = pnand %p252, %p253
    %p255 = pneg %p254
    // Predicated region
    $region41: #{encoder_forward.3} parent=5 // pred_check
      _
    $region42: #{encoder_forward.3} parent=5 // pred_check_branch
      %257 = sbr.rel (%p254) target = $region44
    $region43: #{encoder_forward.3} parent=5 // pred_region
      %s258 = ssub.s32 %s12, 1
      %p259 = scmp.lt.s32.totalorder %s21, 1
      %s260 = scalar_select %p259, %s21, 1
      %s261 = smul.addr %s260, 2
      %s262 = smul.addr %s261, 8
      %s263 = scalar_lea.vmem %s0, %s262
      %p264 = pneg %p50
      %p265 = pneg %p47
      %p266 = scmp.lt.s32.totalorder %s21, 1
      %s267 = scalar_select %p266, %s21, 1
      %s268 = smul.addr %s267, 2
      %s269 = smul.addr %s268, 8
      %s270 = scalar_lea.vmem %s1, %s269
      %p271 = pneg %p76
      %p272 = pneg %p73
      %p273 = scmp.lt.s32.totalorder %s22, 2
      %s274 = scalar_select %p273, %s22, 2
      %s275 = smul.addr %s274, 96
      %s276 = smul.addr %s275, 4
      %s277 = scalar_lea.vmem %s2, %s276
      %p278 = pneg %p102
      %p279 = pneg %p99
      %p280 = scmp.lt.s32.totalorder %s22, 2
      %s281 = scalar_select %p280, %s22, 2
      %s282 = smul.addr %s281, 2
      %s283 = scalar_lea.vmem %s3, %s282
      %p284 = pneg %p128
      %p285 = pneg %p125
      %p286 = pneg %p149
      %p287 = pneg %p146
      %p288 = pneg %p170
      %p289 = pneg %p167
      %p290 = pneg %p196
      %p291 = pneg %p193
      %p292 = scmp.lt.s32.totalorder %s21, 1
      %s293 = scalar_select %p292, %s21, 1
      %s294 = smul.addr %s293, 2
      %s295 = smul.addr %s294, 8
      %s296 = scalar_lea.vmem %s6, %s295
      %p297 = scmp.lt.s32.totalorder %s21, 1
      %s298 = scalar_select %p297, %s21, 1
      %s299 = smul.addr %s298, 2
      %s300 = smul.addr %s299, 8
      %s301 = scalar_lea.vmem %s0, %s300
      %p302 = scmp.lt.s32.totalorder %s21, 1
      %s303 = scalar_select %p302, %s21, 1
      %s304 = smul.addr %s303, 2
      %s305 = smul.addr %s304, 8
      %s306 = scalar_lea.vmem %s1, %s305
      %p307 = scmp.lt.s32.totalorder %s22, 2
      %s308 = scalar_select %p307, %s22, 2
      %s309 = smul.addr %s308, 96
      %s310 = smul.addr %s309, 4
      %s311 = scalar_lea.vmem %s2, %s310
      %p312 = scmp.lt.s32.totalorder %s22, 2
      %s313 = scalar_select %p312, %s22, 2
      %s314 = smul.addr %s313, 2
      %s315 = scalar_lea.vmem %s3, %s314
      %p316 = scmp.lt.s32.totalorder %s21, 1
      %s317 = scalar_select %p316, %s21, 1
      %s318 = smul.addr %s317, 2
      %s319 = smul.addr %s318, 8
      %s320 = scalar_lea.vmem %s6, %s319
      %p322 = scmp.lt.s32.totalorder %s22, 0
      %s323 = ssub.s32 0, %s22
      %s324 = scalar_select %p322, %s323, %s22
      %s325 = sand.u32 %s324, 1
      %s326 = ssub.s32 0, %s325
      %s327 = scalar_select %p322, %s326, %s325
      %p328 = scmp.ne.s32.totalorder %s327, 0
      %p329 = scmp.lt.s32.totalorder %s327, 0
      %p330 = pnand %p329, %p328
      %p331 = pneg %p330
      %s332 = sadd.s32 %s327, 2
      %s333 = scalar_select %p331, %s332, %s327
      %s334 = ssub.s32 1, %s333
      %p335 = scmp.eq.s32.totalorder %s22, 0
      // Predicated region
      $region45: #{encoder_forward.3} parent=43 // pred_check
        %p336 = pneg %p335
      $region46: #{encoder_forward.3} parent=43 // pred_check_branch
        %338 = sbr.rel (%p336) target = $region48
      $region47: #{encoder_forward.3} parent=43 // pred_region
        %339 = vst [vmem:[#allocation2] sm:$0xf] 0
        %340 = vst [vmem:[#allocation2 + $0x8] sm:$0xf0] 0
        %s341 = scalar_lea.vmem [#allocation2], 16
        %342 = vst [vmem:[%s341] sm:$0xf] 0
        %343 = vst [vmem:[%s341 + $0x8] sm:$0xf0] 0
        %v344 = vld [vmem:[%s301] sm:$0xff]
        %v345 = vld [vmem:[%s301 + $0x8] sm:$0xff]
        %v346 = vpack.c.bf16 %v345, %v344
        %v348 = vrot.slane %v346, 4
        %350 = vst [vmem:[#allocation2] sm:$0xf0] %v348
        %351 = vst [vmem:[#allocation2 + $0x8] sm:$0xf] %v348
      $region48: #{encoder_forward.3} parent=43 // pred_fallthru
        _
      %v352 = vld [vmem:[%s315] sm:$0x3]
      %s353 = smul.u32 %s333, 2
      %s354 = smul.addr %s353, 8
      %s355 = scalar_lea.vmem [#allocation2], %s354
      %v356 = vld [vmem:[%s355] sm:$0xf8]
      %v357 = vld [vmem:[%s355 + $0x8] sm:$0xf]
      %v358 = vld [vmem:[%s311] sm:$0xff]
      %v359 = vld [vmem:[%s311 + $0x8] sm:$0xff]
      %v360 = vld [vmem:[%s311 + $0x10] sm:$0xff]
      %v361 = vld [vmem:[%s311 + $0x18] sm:$0xff]
      %v362 = vld [vmem:[%s311 + $0x20] sm:$0xff]
      %v363 = vld [vmem:[%s311 + $0x28] sm:$0xff]
      %v364 = vld [vmem:[%s311 + $0x30] sm:$0xff]
      %v365 = vld [vmem:[%s311 + $0x38] sm:$0xff]
      %v366 = vld [vmem:[%s311 + $0x40] sm:$0xff]
      %v367 = vld [vmem:[%s311 + $0x48] sm:$0xff]
      %v368 = vld [vmem:[%s311 + $0x50] sm:$0xff]
      %v369 = vld [vmem:[%s311 + $0x58] sm:$0xff]
      %v370 = vld [vmem:[%s311 + $0x60] sm:$0xff]
      %v371 = vld [vmem:[%s311 + $0x68] sm:$0xff]
      %v372 = vld [vmem:[%s311 + $0x70] sm:$0xff]
      %v373 = vld [vmem:[%s311 + $0x78] sm:$0xff]
      %v374 = vld [vmem:[%s355] sm:$0xf0]
      %s375 = scalar_lea.vmem %s311, 128
      %v376 = vld [vmem:[%s375] sm:$0xff]
      %v377 = vld [vmem:[%s375 + $0x8] sm:$0xff]
      %v378 = vld [vmem:[%s375 + $0x10] sm:$0xff]
      %v379 = vld [vmem:[%s375 + $0x18] sm:$0xff]
      %v380 = vld [vmem:[%s375 + $0x20] sm:$0xff]
      %v381 = vld [vmem:[%s375 + $0x28] sm:$0xff]
      %v382 = vld [vmem:[%s375 + $0x30] sm:$0xff]
      %v383 = vld [vmem:[%s375 + $0x38] sm:$0xff]
      %v384 = vld [vmem:[%s375 + $0x40] sm:$0xff]
      %v385 = vld [vmem:[%s375 + $0x48] sm:$0xff]
      %v386 = vld [vmem:[%s375 + $0x50] sm:$0xff]
      %v387 = vld [vmem:[%s375 + $0x58] sm:$0xff]
      %v388 = vld [vmem:[%s375 + $0x60] sm:$0xff]
      %v389 = vld [vmem:[%s375 + $0x68] sm:$0xff]
      %v390 = vld [vmem:[%s375 + $0x70] sm:$0xff]
      %v391 = vld [vmem:[%s375 + $0x78] sm:$0xff]
      %vm394 = vcmask 1043456
      %v395 = vrot.slane %v374, 4
      %v396 = vrot.slane %v357, 4
      %v397 = vsel %vm394, %v395, %v396
      %v415 = vunpack.c.l.b16 %v376
      %v416 = vunpack.c.h.b16 %v376
      %v417 = vunpack.c.l.b16 %v377
      %v418 = vunpack.c.h.b16 %v377
      %v419 = vunpack.c.l.b16 %v378
      %v420 = vunpack.c.h.b16 %v378
      %v421 = vunpack.c.l.b16 %v379
      %v422 = vunpack.c.h.b16 %v379
      %v423 = vunpack.c.l.b16 %v380
      %v424 = vunpack.c.h.b16 %v380
      %v425 = vunpack.c.l.b16 %v381
      %v426 = vunpack.c.h.b16 %v381
      %v427 = vunpack.c.l.b16 %v382
      %v428 = vunpack.c.h.b16 %v382
      %v429 = vunpack.c.l.b16 %v383
      %v430 = vunpack.c.h.b16 %v383
      %v431 = vunpack.c.l.b16 %v384
      %v432 = vunpack.c.h.b16 %v384
      %v433 = vunpack.c.l.b16 %v385
      %v434 = vunpack.c.h.b16 %v385
      %v435 = vunpack.c.l.b16 %v386
      %v436 = vunpack.c.h.b16 %v386
      %v437 = vunpack.c.l.b16 %v387
      %v438 = vunpack.c.h.b16 %v387
      %v439 = vunpack.c.l.b16 %v388
      %v440 = vunpack.c.h.b16 %v388
      %v441 = vunpack.c.l.b16 %v389
      %v442 = vunpack.c.h.b16 %v389
      %v443 = vunpack.c.l.b16 %v390
      %v444 = vunpack.c.h.b16 %v390
      %v445 = vunpack.c.l.b16 %v391
      %v446 = vunpack.c.h.b16 %v391
      %v447 = vpack.c.b16 %v417, %v415
      %v448 = vpack.c.b16 %v418, %v416
      %v449 = vpack.c.b16 %v421, %v419
      %v450 = vpack.c.b16 %v422, %v420
      %v451 = vpack.c.b16 %v425, %v423
      %v452 = vpack.c.b16 %v426, %v424
      %v453 = vpack.c.b16 %v429, %v427
      %v454 = vpack.c.b16 %v430, %v428
      %v455 = vpack.c.b16 %v433, %v431
      %v456 = vpack.c.b16 %v434, %v432
      %v457 = vpack.c.b16 %v437, %v435
      %v458 = vpack.c.b16 %v438, %v436
      %v459 = vpack.c.b16 %v441, %v439
      %v460 = vpack.c.b16 %v442, %v440
      %v461 = vpack.c.b16 %v445, %v443
      %v462 = vpack.c.b16 %v446, %v444
      %479 = vmatprep.subr.bf16.mxu0 %v448
      %480 = vmatpush1.bf16.msra.mxu0 %v447
      %481 = vmatprep.subr.bf16.mxu0 %v450
      %482 = vmatpush1.bf16.msra.mxu0 %v449
      %483 = vmatprep.subr.bf16.mxu0 %v452
      %484 = vmatpush1.bf16.msra.mxu0 %v451
      %485 = vmatprep.subr.bf16.mxu0 %v454
      %486 = vmatpush1.bf16.msra.mxu0 %v453
      %487 = vmatprep.subr.bf16.mxu0 %v456
      %488 = vmatpush1.bf16.msra.mxu0 %v455
      %489 = vmatprep.subr.bf16.mxu0 %v458
      %490 = vmatpush1.bf16.msra.mxu0 %v457
      %491 = vmatprep.subr.bf16.mxu0 %v460
      %492 = vmatpush1.bf16.msra.mxu0 %v459
      %493 = vmatprep.subr.bf16.mxu0 %v462
      %494 = vmatpush1.bf16.msra.mxu0 %v461
      %495 = vmatprep.subr.bf16.mxu0 0
      %496 = vmatpush1.bf16.msra.mxu0 0
      %497 = vmatprep.subr.bf16.mxu0 0
      %498 = vmatpush1.bf16.msra.mxu0 0
      %499 = vmatprep.subr.bf16.mxu0 0
      %500 = vmatpush1.bf16.msra.mxu0 0
      %501 = vmatprep.subr.bf16.mxu0 0
      %502 = vmatpush1.bf16.msra.mxu0 0
      %503 = vmatprep.subr.bf16.mxu0 0
      %504 = vmatpush1.bf16.msra.mxu0 0
      %505 = vmatprep.subr.bf16.mxu0 0
      %506 = vmatpush1.bf16.msra.mxu0 0
      %507 = vmatprep.subr.bf16.mxu0 0
      %508 = vmatpush1.bf16.msra.mxu0 0
      %509 = vmatprep.subr.bf16.mxu0 0
      %510 = vmatpush1.bf16.msra.mxu0 0
      %511 = vmatprep.mubr.bf16.mxu0 0
      %512 = vmatmul.mubr.bf16.gmra.mrb[0].mxu0 %v397
      %v513 = vpop.f32.mrb[0].mxu0
      %v514 = vadd.f32 0.0, %v513
      %v515 = vpop.f32.mrb[0].mxu0
      %v516 = vadd.f32 0.0, %v515
      %v517 = vpop.f32.mrb[0].mxu0
      %v518 = vadd.f32 0.0, %v517
      %v519 = vpop.f32.mrb[0].mxu0
      %v520 = vadd.f32 0.0, %v519
      %521 = vdwg.mxu0
      %vm522 = vsmask.f32 4352
      %v524 = vshrl.u32 %v356, 16
      %v526 = vrot.slane %v524, 3
      %v527 = vshll.u32 %v356, 16
      %v529 = vrot.slane %v527, 4
      %v530 = vor.u32 %v526, %v529
      %v532 = vshrl.u32 %v357, 16
      %v534 = vrot.slane %v532, 3
      %v535 = vshll.u32 %v357, 16
      %v537 = vrot.slane %v535, 4
      %v538 = vor.u32 %v534, %v537
      %v539 = vsel %vm522, %v530, %v538
      %v557 = vunpack.c.l.b16 %v358
      %v558 = vunpack.c.h.b16 %v358
      %v559 = vunpack.c.l.b16 %v359
      %v560 = vunpack.c.h.b16 %v359
      %v561 = vunpack.c.l.b16 %v360
      %v562 = vunpack.c.h.b16 %v360
      %v563 = vunpack.c.l.b16 %v361
      %v564 = vunpack.c.h.b16 %v361
      %v565 = vunpack.c.l.b16 %v362
      %v566 = vunpack.c.h.b16 %v362
      %v567 = vunpack.c.l.b16 %v363
      %v568 = vunpack.c.h.b16 %v363
      %v569 = vunpack.c.l.b16 %v364
      %v570 = vunpack.c.h.b16 %v364
      %v571 = vunpack.c.l.b16 %v365
      %v572 = vunpack.c.h.b16 %v365
      %v573 = vunpack.c.l.b16 %v366
      %v574 = vunpack.c.h.b16 %v366
      %v575 = vunpack.c.l.b16 %v367
      %v576 = vunpack.c.h.b16 %v367
      %v577 = vunpack.c.l.b16 %v368
      %v578 = vunpack.c.h.b16 %v368
      %v579 = vunpack.c.l.b16 %v369
      %v580 = vunpack.c.h.b16 %v369
      %v581 = vunpack.c.l.b16 %v370
      %v582 = vunpack.c.h.b16 %v370
      %v583 = vunpack.c.l.b16 %v371
      %v584 = vunpack.c.h.b16 %v371
      %v585 = vunpack.c.l.b16 %v372
      %v586 = vunpack.c.h.b16 %v372
      %v587 = vunpack.c.l.b16 %v373
      %v588 = vunpack.c.h.b16 %v373
      %v589 = vpack.c.b16 %v559, %v557
      %v590 = vpack.c.b16 %v560, %v558
      %v591 = vpack.c.b16 %v563, %v561
      %v592 = vpack.c.b16 %v564, %v562
      %v593 = vpack.c.b16 %v567, %v565
      %v594 = vpack.c.b16 %v568, %v566
      %v595 = vpack.c.b16 %v571, %v569
      %v596 = vpack.c.b16 %v572, %v570
      %v597 = vpack.c.b16 %v575, %v573
      %v598 = vpack.c.b16 %v576, %v574
      %v599 = vpack.c.b16 %v579, %v577
      %v600 = vpack.c.b16 %v580, %v578
      %v601 = vpack.c.b16 %v583, %v581
      %v602 = vpack.c.b16 %v584, %v582
      %v603 = vpack.c.b16 %v587, %v585
      %v604 = vpack.c.b16 %v588, %v586
      %621 = vmatprep.subr.bf16.mxu0 %v590
      %622 = vmatpush1.bf16.msra.mxu0 %v589
      %623 = vmatprep.subr.bf16.mxu0 %v592
      %624 = vmatpush1.bf16.msra.mxu0 %v591
      %625 = vmatprep.subr.bf16.mxu0 %v594
      %626 = vmatpush1.bf16.msra.mxu0 %v593
      %627 = vmatprep.subr.bf16.mxu0 %v596
      %628 = vmatpush1.bf16.msra.mxu0 %v595
      %629 = vmatprep.subr.bf16.mxu0 %v598
      %630 = vmatpush1.bf16.msra.mxu0 %v597
      %631 = vmatprep.subr.bf16.mxu0 %v600
      %632 = vmatpush1.bf16.msra.mxu0 %v599
      %633 = vmatprep.subr.bf16.mxu0 %v602
      %634 = vmatpush1.bf16.msra.mxu0 %v601
      %635 = vmatprep.subr.bf16.mxu0 %v604
      %636 = vmatpush1.bf16.msra.mxu0 %v603
      %637 = vmatprep.subr.bf16.mxu0 0
      %638 = vmatpush1.bf16.msra.mxu0 0
      %639 = vmatprep.subr.bf16.mxu0 0
      %640 = vmatpush1.bf16.msra.mxu0 0
      %641 = vmatprep.subr.bf16.mxu0 0
      %642 = vmatpush1.bf16.msra.mxu0 0
      %643 = vmatprep.subr.bf16.mxu0 0
      %644 = vmatpush1.bf16.msra.mxu0 0
      %645 = vmatprep.subr.bf16.mxu0 0
      %646 = vmatpush1.bf16.msra.mxu0 0
      %647 = vmatprep.subr.bf16.mxu0 0
      %648 = vmatpush1.bf16.msra.mxu0 0
      %649 = vmatprep.subr.bf16.mxu0 0
      %650 = vmatpush1.bf16.msra.mxu0 0
      %651 = vmatprep.subr.bf16.mxu0 0
      %652 = vmatpush1.bf16.msra.mxu0 0
      %653 = vmatprep.mubr.bf16.mxu0 0
      %654 = vmatmul.mubr.bf16.gmra.mrb[0].mxu0 %v539
      %v655 = vpop.f32.mrb[0].mxu0
      %v656 = vadd.f32 %v514, %v655
      %v657 = vpop.f32.mrb[0].mxu0
      %v658 = vadd.f32 %v516, %v657
      %v659 = vpop.f32.mrb[0].mxu0
      %v660 = vadd.f32 %v518, %v659
      %v661 = vpop.f32.mrb[0].mxu0
      %v662 = vadd.f32 %v520, %v661
      %663 = vdwg.mxu0
      %v664 = vld [vmem:[%s355 + $0x8] sm:$0x1f]
      %s665 = scalar_lea.vmem %s311, 256
      %v666 = vld [vmem:[%s665] sm:$0xff]
      %v667 = vld [vmem:[%s665 + $0x8] sm:$0xff]
      %v668 = vld [vmem:[%s665 + $0x10] sm:$0xff]
      %v669 = vld [vmem:[%s665 + $0x18] sm:$0xff]
      %v670 = vld [vmem:[%s665 + $0x20] sm:$0xff]
      %v671 = vld [vmem:[%s665 + $0x28] sm:$0xff]
      %v672 = vld [vmem:[%s665 + $0x30] sm:$0xff]
      %v673 = vld [vmem:[%s665 + $0x38] sm:$0xff]
      %v674 = vld [vmem:[%s665 + $0x40] sm:$0xff]
      %v675 = vld [vmem:[%s665 + $0x48] sm:$0xff]
      %v676 = vld [vmem:[%s665 + $0x50] sm:$0xff]
      %v677 = vld [vmem:[%s665 + $0x58] sm:$0xff]
      %v678 = vld [vmem:[%s665 + $0x60] sm:$0xff]
      %v679 = vld [vmem:[%s665 + $0x68] sm:$0xff]
      %v680 = vld [vmem:[%s665 + $0x70] sm:$0xff]
      %v681 = vld [vmem:[%s665 + $0x78] sm:$0xff]
      %vm682 = vsmask.f32 3328
      %v684 = vshrl.u32 %v374, 16
      %v686 = vrot.slane %v684, 4
      %v687 = vshll.u32 %v374, 16
      %v689 = vrot.slane %v687, 5
      %v690 = vor.u32 %v686, %v689
      %v692 = vshrl.u32 %v664, 16
      %v694 = vrot.slane %v692, 4
      %v695 = vshll.u32 %v664, 16
      %v697 = vrot.slane %v695, 5
      %v698 = vor.u32 %v694, %v697
      %v699 = vsel %vm682, %v690, %v698
      %v717 = vunpack.c.l.b16 %v666
      %v718 = vunpack.c.h.b16 %v666
      %v719 = vunpack.c.l.b16 %v667
      %v720 = vunpack.c.h.b16 %v667
      %v721 = vunpack.c.l.b16 %v668
      %v722 = vunpack.c.h.b16 %v668
      %v723 = vunpack.c.l.b16 %v669
      %v724 = vunpack.c.h.b16 %v669
      %v725 = vunpack.c.l.b16 %v670
      %v726 = vunpack.c.h.b16 %v670
      %v727 = vunpack.c.l.b16 %v671
      %v728 = vunpack.c.h.b16 %v671
      %v729 = vunpack.c.l.b16 %v672
      %v730 = vunpack.c.h.b16 %v672
      %v731 = vunpack.c.l.b16 %v673
      %v732 = vunpack.c.h.b16 %v673
      %v733 = vunpack.c.l.b16 %v674
      %v734 = vunpack.c.h.b16 %v674
      %v735 = vunpack.c.l.b16 %v675
      %v736 = vunpack.c.h.b16 %v675
      %v737 = vunpack.c.l.b16 %v676
      %v738 = vunpack.c.h.b16 %v676
      %v739 = vunpack.c.l.b16 %v677
      %v740 = vunpack.c.h.b16 %v677
      %v741 = vunpack.c.l.b16 %v678
      %v742 = vunpack.c.h.b16 %v678
      %v743 = vunpack.c.l.b16 %v679
      %v744 = vunpack.c.h.b16 %v679
      %v745 = vunpack.c.l.b16 %v680
      %v746 = vunpack.c.h.b16 %v680
      %v747 = vunpack.c.l.b16 %v681
      %v748 = vunpack.c.h.b16 %v681
      %v749 = vpack.c.b16 %v719, %v717
      %v750 = vpack.c.b16 %v720, %v718
      %v751 = vpack.c.b16 %v723, %v721
      %v752 = vpack.c.b16 %v724, %v722
      %v753 = vpack.c.b16 %v727, %v725
      %v754 = vpack.c.b16 %v728, %v726
      %v755 = vpack.c.b16 %v731, %v729
      %v756 = vpack.c.b16 %v732, %v730
      %v757 = vpack.c.b16 %v735, %v733
      %v758 = vpack.c.b16 %v736, %v734
      %v759 = vpack.c.b16 %v739, %v737
      %v760 = vpack.c.b16 %v740, %v738
      %v761 = vpack.c.b16 %v743, %v741
      %v762 = vpack.c.b16 %v744, %v742
      %v763 = vpack.c.b16 %v747, %v745
      %v764 = vpack.c.b16 %v748, %v746
      %781 = vmatprep.subr.bf16.mxu0 %v750
      %782 = vmatpush1.bf16.msra.mxu0 %v749
      %783 = vmatprep.subr.bf16.mxu0 %v752
      %784 = vmatpush1.bf16.msra.mxu0 %v751
      %785 = vmatprep.subr.bf16.mxu0 %v754
      %786 = vmatpush1.bf16.msra.mxu0 %v753
      %787 = vmatprep.subr.bf16.mxu0 %v756
      %788 = vmatpush1.bf16.msra.mxu0 %v755
      %789 = vmatprep.subr.bf16.mxu0 %v758
      %790 = vmatpush1.bf16.msra.mxu0 %v757
      %791 = vmatprep.subr.bf16.mxu0 %v760
      %792 = vmatpush1.bf16.msra.mxu0 %v759
      %793 = vmatprep.subr.bf16.mxu0 %v762
      %794 = vmatpush1.bf16.msra.mxu0 %v761
      %795 = vmatprep.subr.bf16.mxu0 %v764
      %796 = vmatpush1.bf16.msra.mxu0 %v763
      %797 = vmatprep.subr.bf16.mxu0 0
      %798 = vmatpush1.bf16.msra.mxu0 0
      %799 = vmatprep.subr.bf16.mxu0 0
      %800 = vmatpush1.bf16.msra.mxu0 0
      %801 = vmatprep.subr.bf16.mxu0 0
      %802 = vmatpush1.bf16.msra.mxu0 0
      %803 = vmatprep.subr.bf16.mxu0 0
      %804 = vmatpush1.bf16.msra.mxu0 0
      %805 = vmatprep.subr.bf16.mxu0 0
      %806 = vmatpush1.bf16.msra.mxu0 0
      %807 = vmatprep.subr.bf16.mxu0 0
      %808 = vmatpush1.bf16.msra.mxu0 0
      %809 = vmatprep.subr.bf16.mxu0 0
      %810 = vmatpush1.bf16.msra.mxu0 0
      %811 = vmatprep.subr.bf16.mxu0 0
      %812 = vmatpush1.bf16.msra.mxu0 0
      %813 = vmatprep.mubr.bf16.mxu0 0
      %814 = vmatmul.mubr.bf16.gmra.mrb[0].mxu0 %v699
      %v815 = vpop.f32.mrb[0].mxu0
      %v816 = vadd.f32 0.0, %v815
      %v817 = vpop.f32.mrb[0].mxu0
      %v818 = vadd.f32 0.0, %v817
      %v819 = vpop.f32.mrb[0].mxu0
      %v820 = vadd.f32 0.0, %v819
      %v821 = vpop.f32.mrb[0].mxu0
      %v822 = vadd.f32 0.0, %v821
      %823 = vdwg.mxu0
      %v824 = vadd.f32 %v656, %v816
      %v825 = vadd.f32 %v658, %v818
      %v826 = vadd.f32 %v660, %v820
      %v827 = vadd.f32 %v662, %v822
      %v829 = vlaneseq
      %v830 = vshrl.u32 %v829, 7
      %v831 = vsub.s32 0, %v830
      %v832 = vrot.slane %v352, %v831
      %v833 = vlaneseq
      %v834 = vshrl.u32 %v833, 7
      %v835 = vsub.s32 1, %v834
      %v836 = vrot.slane %v352, %v835
      %v839 = vadd.f32 %v824, %v832
      %v840 = vadd.f32 %v825, %v836
      %v841 = vadd.f32 %v826, %v832
      %v842 = vadd.f32 %v827, %v836
      %v843 = vxor.u32 %v840, 2147483648
      %v844 = vxor.u32 %v842, 2147483648
      %v845 = vmul.f32 %v843, 1.442695
      %v846 = vpow.pop %v845
      %v847 = vmul.f32 %v844, 1.442695
      %v848 = vpow.pop %v847
      %v849 = vadd.f32 %v846, 1.0
      %v850 = vadd.f32 %v848, 1.0
      %v851 = vrcp.pop %v849
      %v852 = vmul.f32 1.0, %v851
      %v853 = vrcp.pop %v850
      %v854 = vmul.f32 1.0, %v853
      %v855 = vmul.f32 %v839, %v852
      %v856 = vmul.f32 %v841, %v854
      %v857 = vunpack.c.l.bf16 %v397
      %v858 = vunpack.c.h.bf16 %v397
      %v859 = vadd.f32 %v855, %v857
      %v860 = vadd.f32 %v856, %v858
      %v861 = vmul.f32 %v859, 0.70710677
      %v862 = vmul.f32 %v860, 0.70710677
      %p863 = scmp.lt.s32.totalorder %s22, 2
      // Predicated region
      $region49: #{encoder_forward.3} parent=43 // pred_check
        %p864 = pneg %p863
      $region50: #{encoder_forward.3} parent=43 // pred_check_branch
        %866 = sbr.rel (%p864) target = $region52
      $region51: #{encoder_forward.3} parent=43 // pred_region
        %v867 = vpack.c.bf16 %v862, %v861
        %s868 = smul.u32 %s334, 2
        %s869 = smul.addr %s868, 8
        %s870 = scalar_lea.vmem [#allocation2], %s869
        %v872 = vrot.slane %v867, 4
        %874 = vst [vmem:[%s870] sm:$0xf0] %v872
        %875 = vst [vmem:[%s870 + $0x8] sm:$0xf] %v872
      $region52: #{encoder_forward.3} parent=43 // pred_fallthru
        _
      %p876 = scmp.eq.s32.totalorder %s22, 2
      // Predicated region
      $region53: #{encoder_forward.3} parent=43 // pred_check
        %p877 = pneg %p876
      $region54: #{encoder_forward.3} parent=43 // pred_check_branch
        %879 = sbr.rel (%p877) target = $region56
      $region55: #{encoder_forward.3} parent=43 // pred_region
        %v880 = vpack.c.bf16 %v862, %v861
        %v881 = vld [vmem:[%s4] sm:$0xf]
        %v882 = vld [vmem:[%s4 + $0x4] sm:$0xf]
        %v883 = vld [vmem:[%s4 + $0x8] sm:$0xf]
        %v884 = vld [vmem:[%s4 + $0xc] sm:$0xf]
        %v885 = vld [vmem:[%s4 + $0x10] sm:$0xf]
        %v886 = vld [vmem:[%s4 + $0x14] sm:$0xf]
        %v887 = vld [vmem:[%s4 + $0x18] sm:$0xf]
        %v888 = vld [vmem:[%s4 + $0x1c] sm:$0xf]
        %v889 = vld [vmem:[%s4 + $0x20] sm:$0xf]
        %v890 = vld [vmem:[%s4 + $0x24] sm:$0xf]
        %v891 = vld [vmem:[%s4 + $0x28] sm:$0xf]
        %v892 = vld [vmem:[%s4 + $0x2c] sm:$0xf]
        %v893 = vld [vmem:[%s4 + $0x30] sm:$0xf]
        %v894 = vld [vmem:[%s4 + $0x34] sm:$0xf]
        %v895 = vld [vmem:[%s4 + $0x38] sm:$0xf]
        %v896 = vld [vmem:[%s4 + $0x3c] sm:$0xf]
        %v897 = vld [vmem:[%s5] sm:$0x1]
        %v899 = vlaneseq
        %v900 = vshrl.u32 %v899, 7
        %v901 = vsub.s32 0, %v900
        %v902 = vrot.slane %v897, %v901
        %v920 = vunpack.c.l.b16 %v881
        %v921 = vunpack.c.l.b16 %v882
        %v922 = vunpack.c.l.b16 %v883
        %v923 = vunpack.c.l.b16 %v884
        %v924 = vunpack.c.l.b16 %v885
        %v925 = vunpack.c.l.b16 %v886
        %v926 = vunpack.c.l.b16 %v887
        %v927 = vunpack.c.l.b16 %v888
        %v928 = vunpack.c.l.b16 %v889
        %v929 = vunpack.c.l.b16 %v890
        %v930 = vunpack.c.l.b16 %v891
        %v931 = vunpack.c.l.b16 %v892
        %v932 = vunpack.c.l.b16 %v893
        %v933 = vunpack.c.l.b16 %v894
        %v934 = vunpack.c.l.b16 %v895
        %v935 = vunpack.c.l.b16 %v896
        %v936 = vpack.c.b16 %v921, %v920
        %v937 = vpack.c.b16 %v923, %v922
        %v938 = vpack.c.b16 %v925, %v924
        %v939 = vpack.c.b16 %v927, %v926
        %v940 = vpack.c.b16 %v929, %v928
        %v941 = vpack.c.b16 %v931, %v930
        %v942 = vpack.c.b16 %v933, %v932
        %v943 = vpack.c.b16 %v935, %v934
        %952 = vmatprep.subr.bf16.mxu0 0
        %953 = vmatpush1.bf16.msra.mxu0 %v936
        %954 = vmatprep.subr.bf16.mxu0 0
        %955 = vmatpush1.bf16.msra.mxu0 %v937
        %956 = vmatprep.subr.bf16.mxu0 0
        %957 = vmatpush1.bf16.msra.mxu0 %v938
        %958 = vmatprep.subr.bf16.mxu0 0
        %959 = vmatpush1.bf16.msra.mxu0 %v939
        %960 = vmatprep.subr.bf16.mxu0 0
        %961 = vmatpush1.bf16.msra.mxu0 %v940
        %962 = vmatprep.subr.bf16.mxu0 0
        %963 = vmatpush1.bf16.msra.mxu0 %v941
        %964 = vmatprep.subr.bf16.mxu0 0
        %965 = vmatpush1.bf16.msra.mxu0 %v942
        %966 = vmatprep.subr.bf16.mxu0 0
        %967 = vmatpush1.bf16.msra.mxu0 %v943
        %968 = vmatprep.subr.bf16.mxu0 0
        %969 = vmatpush1.bf16.msra.mxu0 0
        %970 = vmatprep.subr.bf16.mxu0 0
        %971 = vmatpush1.bf16.msra.mxu0 0
        %972 = vmatprep.subr.bf16.mxu0 0
        %973 = vmatpush1.bf16.msra.mxu0 0
        %974 = vmatprep.subr.bf16.mxu0 0
        %975 = vmatpush1.bf16.msra.mxu0 0
        %976 = vmatprep.subr.bf16.mxu0 0
        %977 = vmatpush1.bf16.msra.mxu0 0
        %978 = vmatprep.subr.bf16.mxu0 0
        %979 = vmatpush1.bf16.msra.mxu0 0
        %980 = vmatprep.subr.bf16.mxu0 0
        %981 = vmatpush1.bf16.msra.mxu0 0
        %982 = vmatprep.subr.bf16.mxu0 0
        %983 = vmatpush1.bf16.msra.mxu0 0
        %984 = vmatprep.mubr.bf16.mxu0 0
        %985 = vmatmul.mubr.bf16.gmra.mrb[0].mxu0 %v880
        %v986 = vpop.f32.mrb[0].mxu0
        %v987 = vadd.f32 %v902, %v986
        %v988 = vpop.f32.mrb[0].mxu0
        %v989 = vpop.f32.mrb[0].mxu0
        %v990 = vadd.f32 %v902, %v989
        %v991 = vpop.f32.mrb[0].mxu0
        %992 = vdwg.mxu0
        %v993 = vld [vmem:[%s306] sm:$0xff]
        %v994 = vld [vmem:[%s306 + $0x8] sm:$0xff]
        %v995 = vadd.f32 %v987, %v993
        %v996 = vadd.f32 %v990, %v994
        %v997 = vmul.f32 %v995, 0.70710677
        %v998 = vmul.f32 %v996, 0.70710677
        %999 = vst [vmem:[%s320] sm:$0xff] %v997
        %1000 = vst [vmem:[%s320 + $0x8] sm:$0xff] %v998
      $region56: #{encoder_forward.3} parent=43 // pred_fallthru
        _
      %p1001 = scmp.lt.s32.totalorder %s21, 1
      %s1002 = scalar_select %p1001, %s21, 1
      %s1003 = smul.addr %s1002, 2
      %s1004 = smul.addr %s1003, 8
      %s1005 = scalar_lea.vmem %s6, %s1004
      // Predicated region
      $region57: #{encoder_forward.3} parent=43 // pred_check
        %p1006 = pneg %p193
      $region58: #{encoder_forward.3} parent=43 // pred_check_branch
        %1008 = sbr.rel (%p1006) target = $region60
      $region59: #{encoder_forward.3} parent=43 // pred_region
        _
      $region60: #{encoder_forward.3} parent=43 // pred_fallthru
        _
    $region44: #{encoder_forward.3} parent=5 // pred_fallthru
      _
    %p1009 = scmp.le.s32.totalorder 2, %s12
    // Predicated region
    $region61: #{encoder_forward.3} parent=5 // pred_check
      %p1010 = pneg %p1009
    $region62: #{encoder_forward.3} parent=5 // pred_check_branch
      %1012 = sbr.rel (%p1010) target = $region64
    $region63: #{encoder_forward.3} parent=5 // pred_region
      %s1013 = ssub.s32 %s12, 2
      // Predicated region
      $region65: #{encoder_forward.3} parent=63 // pred_check
        %p1014 = pneg %p199
      $region66: #{encoder_forward.3} parent=63 // pred_check_branch
        %1016 = sbr.rel (%p1014) target = $region68
      $region67: #{encoder_forward.3} parent=63 // pred_region
        %p1017 = scmp.lt.s32.totalorder %s23, 1
        %s1018 = scalar_select %p1017, %s23, 1
        %s1019 = smul.addr %s1018, 2
        %s1020 = smul.addr %s1019, 8
        %s1021 = scalar_lea.vmem %s6, %s1020
      $region68: #{encoder_forward.3} parent=63 // pred_fallthru
        _
    $region64: #{encoder_forward.3} parent=5 // pred_fallthru
      _
  $region6: #{encoder_forward.3} parent=0 // loop_footer
    %s16 = sadd.s32 1, %s12
  $region7: #{encoder_forward.3} parent=0 // loop_footer_branch
    %11 = sbr.rel target = $region3
  $region8: #{encoder_forward.3} parent=0 // loop_exit
    _

</llo_original>
